<compile_context>
chip_gen: v7x
topology: tpu7x:2x2x1
jax: 0.10.0
libtpu: 0.0.40
codegen_flags: <defaults>
</compile_context>

<pallas_src>
import numpy as np
import jax
import jax.numpy as jnp
from jax.experimental import pallas as pl
from jax.experimental.pallas import tpu as pltpu

EPS = 1e-8  # torch.cosine_similarity eps


def _sim_attractor_kernel(q_ref, k_ref, v_ref, zo_ref, pa_ref):
    # Blocks (TB batch elements per grid step), M = 2*C:
    #   q_ref : (TB, D)   k_ref : (TB, D, N)   v_ref : (TB, M, N)
    #   zo_ref: (TB, M)   pa_ref: (TB, N)
    q = q_ref[...].astype(jnp.float32)   # (TB, D)
    k = k_ref[...].astype(jnp.float32)   # (TB, D, N)
    v = v_ref[...].astype(jnp.float32)   # (TB, M, N)

    # --- cosine similarity along D: batched (1,D) @ (D,N) on the MXU -------
    dot = jnp.einsum(
        "bud,bdn->bun", q[:, None, :], k,
        preferred_element_type=jnp.float32)[:, 0, :]                 # (TB, N)
    q_norm = jnp.sqrt(jnp.sum(q * q, axis=-1, keepdims=True))        # (TB, 1)
    k_norm = jnp.sqrt(jnp.sum(k * k, axis=1))                        # (TB, N)
    denom = jnp.maximum(q_norm * k_norm, EPS)
    scores = dot * pl.reciprocal(denom, approx=True)                 # (TB, N)

    # --- softmax over N (exp + approx reciprocal both on the EUP) ----------
    scores = scores - jnp.max(scores, axis=-1, keepdims=True)
    e = jnp.exp(scores)
    p = e * pl.reciprocal(jnp.sum(e, axis=-1, keepdims=True), approx=True)

    # --- Z_o: batched value @ p on the MXU (contract over N) ---------------
    z = jnp.einsum(
        "bun,bmn->bum", p[:, None, :], v,
        preferred_element_type=jnp.float32)[:, 0, :]                 # (TB, M)

    zo_ref[...] = z.astype(zo_ref.dtype)
    pa_ref[...] = p.astype(pa_ref.dtype)                             # written ONCE


def _choose_tb(B, per_batch_bytes, vmem_budget=12 * 1024 * 1024):
    """Pick batch-tile size: big enough to amortize per-step overhead, small
    enough that the double-buffered footprint fits every generation's scoped
    VMEM default, multiple of 8 (sublane rule), and >=2 grid steps for v7x."""
    if B <= 8:
        return B  # single block == full array dims (always a legal BlockSpec)
    tb = (vmem_budget // (2 * per_batch_bytes)) // 8 * 8   # double-buffered
    tb = int(max(8, min(tb, 512)))
    half = ((-(-B // 2)) + 7) // 8 * 8   # round_up(ceil(B/2), 8): keep >=2 steps
    return min(tb, half)


def sim_attractor(query, key, value):
    B, one, D = query.shape
    assert one == 1
    _, _, N = key.shape
    _, H, C, _ = value.shape
    assert H == 2, "value must carry the duplicated head dim of size 2"
    M = 2 * C
    dtype = query.dtype

    # Free (contiguous) reshapes in the wrapper -- no extra HBM traffic.
    q2 = query.reshape(B, D)
    v2 = value.reshape(B, M, N)
    k2 = key

    per_batch_bytes = 4 * (D + D * N + M * N + M + N)
    TB = _choose_tb(B, per_batch_bytes)
    B_pad = -(-B // TB) * TB
    if B_pad != B:
        pad = B_pad - B
        q2 = jnp.pad(q2, ((0, pad), (0, 0)))
        k2 = jnp.pad(k2, ((0, pad), (0, 0), (0, 0)))
        v2 = jnp.pad(v2, ((0, pad), (0, 0), (0, 0)))
    num_tiles = B_pad // TB

    zo, pa = pl.pallas_call(
        _sim_attractor_kernel,
        out_shape=(
            jax.ShapeDtypeStruct((B_pad, M), dtype),   # Z_o (flattened 2*C)
            jax.ShapeDtypeStruct((B_pad, N), dtype),   # p   (emitted once)
        ),
        grid_spec=pltpu.PrefetchScalarGridSpec(
            num_scalar_prefetch=0,
            grid=(num_tiles,),
            in_specs=[
                pl.BlockSpec((TB, D), lambda b: (b, 0)),
                pl.BlockSpec((TB, D, N), lambda b: (b, 0, 0)),
                pl.BlockSpec((TB, M, N), lambda b: (b, 0, 0)),
            ],
            out_specs=[
                pl.BlockSpec((TB, M), lambda b: (b, 0)),
                pl.BlockSpec((TB, N), lambda b: (b, 0)),
            ],
        ),
        compiler_params=pltpu.CompilerParams(
            dimension_semantics=("parallel",),          # v7x: shard batch tiles over 2 TCs
            vmem_limit_bytes=32 * 1024 * 1024,          # safe on v5e/v6e/v7x
        ),
    )(q2, k2, v2)

    Z_o = zo[:B].reshape(B, 2, C)
    p = pa[:B]
    p_attn = jnp.broadcast_to(p[:, None, :], (B, 2, N))  # duplicate outside the kernel
    return Z_o, p_attn


def sim_attractor_ref(query, key, value):
    """Pure-JAX reference mirroring the PyTorch forward exactly."""
    kT = jnp.swapaxes(key, -1, -2)                      # (B, N, D)
    q = jnp.broadcast_to(query, kT.shape)               # (B, N, D) (expand_as)
    dot = jnp.sum(q * kT, axis=-1)                      # (B, N)
    qn = jnp.sqrt(jnp.sum(q * q, axis=-1))
    kn = jnp.sqrt(jnp.sum(kT * kT, axis=-1))
    scores = dot / jnp.maximum(qn * kn, EPS)            # (B, N)
    p = jax.nn.softmax(scores, axis=-1)[:, None, :]     # (B, 1, N)
    p2 = jnp.concatenate([p, p], axis=1)[..., None]     # (B, 2, N, 1)
    Z = jnp.matmul(value, p2)[..., 0]                   # (B, 2, C)
    return Z, p2[..., 0]                                # (B,2,C), (B,2,N)


if __name__ == "__main__":
    B, D, N, C = 16, 32, 16, 8   # small, exercises 2 batch tiles of TB=8
    key0 = jax.random.PRNGKey(0)
    kq, kk, kv = jax.random.split(key0, 3)

    query = jax.random.normal(kq, (B, 1, D), dtype=jnp.float32)
    key = jax.random.normal(kk, (B, D, N), dtype=jnp.float32)
    value = jax.random.normal(kv, (B, 2, C, N), dtype=jnp.float32)

    z_o, p_attn = sim_attractor(query, key, value)
    jax.block_until_ready((z_o, p_attn))

    z_ref, p_ref = sim_attractor_ref(query, key, value)
    # Tolerance accounts for the EUP approx-reciprocal path (rel err ~1e-4).
    np.testing.assert_allclose(np.asarray(z_o), np.asarray(z_ref), rtol=2e-3, atol=2e-3)
    np.testing.assert_allclose(np.asarray(p_attn), np.asarray(p_ref), rtol=2e-3, atol=2e-3)

    print("KERNEL_OK")
</pallas_src>

<mosaic_0001>
module attributes {stable_mosaic.version = 11 : i64} {
  func.func @_sim_attractor_kernel(%arg0: i32, %arg1: memref<8x32xf32, #tpu.memory_space<vmem>>, %arg2: memref<8x32x16xf32, #tpu.memory_space<vmem>>, %arg3: memref<8x16x16xf32, #tpu.memory_space<vmem>>, %arg4: memref<8x16xf32, #tpu.memory_space<vmem>>, %arg5: memref<8x16xf32, #tpu.memory_space<vmem>>) attributes {dimension_semantics = [#tpu.dimension_semantics<parallel>], iteration_bounds = array<i64: 2>, scalar_prefetch = 0 : i64, scratch_operands = 0 : i64, tpu.core_type = #tpu.core_type<tc>, window_params = [{transform_indices = @transform_0, window_bounds = array<i64: 8, 32>}, {transform_indices = @transform_1, window_bounds = array<i64: 8, 32, 16>}, {transform_indices = @transform_2, window_bounds = array<i64: 8, 16, 16>}, {transform_indices = @transform_3, window_bounds = array<i64: 8, 16>}, {transform_indices = @transform_4, window_bounds = array<i64: 8, 16>}]} {
    %c0 = arith.constant 0 : index
    %c0_0 = arith.constant 0 : index
    %0 = vector.load %arg1[%c0, %c0_0] : memref<8x32xf32, #tpu.memory_space<vmem>>, vector<8x32xf32>
    %c0_1 = arith.constant 0 : index
    %c0_2 = arith.constant 0 : index
    %c0_3 = arith.constant 0 : index
    %1 = vector.load %arg2[%c0_1, %c0_2, %c0_3] : memref<8x32x16xf32, #tpu.memory_space<vmem>>, vector<8x32x16xf32>
    %c0_4 = arith.constant 0 : index
    %c0_5 = arith.constant 0 : index
    %c0_6 = arith.constant 0 : index
    %2 = vector.load %arg3[%c0_4, %c0_5, %c0_6] : memref<8x16x16xf32, #tpu.memory_space<vmem>>, vector<8x16x16xf32>
    %3 = vector.shape_cast %0 : vector<8x32xf32> to vector<8x1x32xf32>
    "tpu.trace_start"() <{level = 10 : i32, message = "bud,bdn->bun"}> : () -> ()
    %cst = arith.constant dense<0.000000e+00> : vector<8x1x16xf32>
    %4 = tpu.matmul %3, %1, %cst {dimension_numbers = #tpu.dot_dimension_numbers<[2], [1], [1], [2], [0, 0, 0, 1, 1, 2], [0], [0]>} : vector<8x1x32xf32>, vector<8x32x16xf32>, vector<8x1x16xf32> -> vector<8x1x16xf32>
    "tpu.trace_stop"() : () -> ()
    %5 = vector.shape_cast %4 : vector<8x1x16xf32> to vector<8x16xf32>
    %6 = arith.mulf %0, %0 : vector<8x32xf32>
    %cst_7 = arith.constant dense<0.000000e+00> : vector<8xf32>
    %7 = vector.multi_reduction <add>, %6, %cst_7 [1] : vector<8x32xf32> to vector<8xf32>
    %8 = vector.shape_cast %7 : vector<8xf32> to vector<8x1xf32>
    %9 = math.sqrt %8 : vector<8x1xf32>
    %10 = arith.mulf %1, %1 : vector<8x32x16xf32>
    %cst_8 = arith.constant dense<0.000000e+00> : vector<8x16xf32>
    %11 = vector.multi_reduction <add>, %10, %cst_8 [1] : vector<8x32x16xf32> to vector<8x16xf32>
    %12 = math.sqrt %11 : vector<8x16xf32>
    %13 = vector.broadcast %9 : vector<8x1xf32> to vector<8x16xf32>
    %14 = arith.mulf %13, %12 : vector<8x16xf32>
    %cst_9 = arith.constant 9.99999993E-9 : f32
    %15 = vector.broadcast %cst_9 : f32 to vector<8x16xf32>
    %16 = arith.maximumf %14, %15 : vector<8x16xf32>
    %17 = tpu.reciprocal %16 {approx = true} : vector<8x16xf32> -> vector<8x16xf32>
    %18 = arith.mulf %5, %17 : vector<8x16xf32>
    %cst_10 = arith.constant dense<0xFF800000> : vector<8xf32>
    %19 = vector.multi_reduction <maximumf>, %18, %cst_10 [1] : vector<8x16xf32> to vector<8xf32>
    %20 = vector.shape_cast %19 : vector<8xf32> to vector<8x1xf32>
    %21 = vector.broadcast %20 : vector<8x1xf32> to vector<8x16xf32>
    %22 = arith.subf %18, %21 : vector<8x16xf32>
    %23 = math.exp %22 : vector<8x16xf32>
    %cst_11 = arith.constant dense<0.000000e+00> : vector<8xf32>
    %24 = vector.multi_reduction <add>, %23, %cst_11 [1] : vector<8x16xf32> to vector<8xf32>
    %25 = vector.shape_cast %24 : vector<8xf32> to vector<8x1xf32>
    %26 = tpu.reciprocal %25 {approx = true} : vector<8x1xf32> -> vector<8x1xf32>
    %27 = vector.broadcast %26 : vector<8x1xf32> to vector<8x16xf32>
    %28 = arith.mulf %23, %27 : vector<8x16xf32>
    %29 = vector.shape_cast %28 : vector<8x16xf32> to vector<8x1x16xf32>
    "tpu.trace_start"() <{level = 10 : i32, message = "bun,bmn->bum"}> : () -> ()
    %cst_12 = arith.constant dense<0.000000e+00> : vector<8x1x16xf32>
    %30 = tpu.matmul %29, %2, %cst_12 {dimension_numbers = #tpu.dot_dimension_numbers<[2], [2], [1], [1], [0, 0, 0, 1, 1, 1], [0], [0]>} : vector<8x1x16xf32>, vector<8x16x16xf32>, vector<8x1x16xf32> -> vector<8x1x16xf32>
    "tpu.trace_stop"() : () -> ()
    %31 = vector.shape_cast %30 : vector<8x1x16xf32> to vector<8x16xf32>
    %c0_13 = arith.constant 0 : index
    %c0_14 = arith.constant 0 : index
    %32 = vector.load %arg4[%c0_13, %c0_14] : memref<8x16xf32, #tpu.memory_space<vmem>>, vector<8x16xf32>
    tpu.vector_store %arg4[%c0_13, %c0_14], %31 {strides = array<i32>} : memref<8x16xf32, #tpu.memory_space<vmem>>, vector<8x16xf32>,
    %c0_15 = arith.constant 0 : index
    %c0_16 = arith.constant 0 : index
    %33 = vector.load %arg5[%c0_15, %c0_16] : memref<8x16xf32, #tpu.memory_space<vmem>>, vector<8x16xf32>
    tpu.vector_store %arg5[%c0_15, %c0_16], %28 {strides = array<i32>} : memref<8x16xf32, #tpu.memory_space<vmem>>, vector<8x16xf32>,
    return
  }
  func.func @transform_0(%arg0: i32) -> (i32, i32) {
    %c0_i32 = arith.constant 0 : i32
    %c0_i32_0 = arith.constant 0 : i32
    return %arg0, %c0_i32 : i32, i32
  }
  func.func @transform_1(%arg0: i32) -> (i32, i32, i32) {
    %c0_i32 = arith.constant 0 : i32
    %c0_i32_0 = arith.constant 0 : i32
    %c0_i32_1 = arith.constant 0 : i32
    return %arg0, %c0_i32, %c0_i32_0 : i32, i32, i32
  }
  func.func @transform_2(%arg0: i32) -> (i32, i32, i32) {
    %c0_i32 = arith.constant 0 : i32
    %c0_i32_0 = arith.constant 0 : i32
    %c0_i32_1 = arith.constant 0 : i32
    return %arg0, %c0_i32, %c0_i32_0 : i32, i32, i32
  }
  func.func @transform_3(%arg0: i32) -> (i32, i32) {
    %c0_i32 = arith.constant 0 : i32
    %c0_i32_0 = arith.constant 0 : i32
    return %arg0, %c0_i32 : i32, i32
  }
  func.func @transform_4(%arg0: i32) -> (i32, i32) {
    %c0_i32 = arith.constant 0 : i32
    %c0_i32_0 = arith.constant 0 : i32
    return %arg0, %c0_i32 : i32, i32
  }
}

</mosaic_0001>

<llo_original>
// kernel: tpu_custom_call.1
$region0: #{tpu_custom_call.1}
  #allocation0 [shape = 'u32[]', space=smem, size = 0x4, offset = 0x4, fixed_abs, tag = 'smem constant byte address 0x4 - core index']
  #allocation1 [shape = 'u32[144,128]{1,0:T(1,128)}', space=vmem, size = 0x12000, scoped, tag = 'internal scratch']
  %s0 = inlined_call_operand.vmem [shape: f32[16,32], index: 0, kind: input, shape index: {}]
  %s1 = inlined_call_operand.vmem [shape: f32[16,32,16], index: 1, kind: input, shape index: {}]
  %s2 = inlined_call_operand.vmem [shape: f32[16,16,16], index: 2, kind: input, shape index: {}]
  %s3 = inlined_call_operand.hbm [shape: f32[16,16], index: 3, kind: output, shape index: {0}]
  %s4 = inlined_call_operand.hbm [shape: f32[16,16], index: 4, kind: output, shape index: {1}]
  %5 = xla_tuple %s3, %s4
  %s6 = sld [smem:[#allocation0]]
  $region53: #{tpu_custom_call.1} parent=0
    _
  %s8 = ssub.s32 1, %s6
  %s9 = scalar_select 0, %s8, %s6
  $region1: #{tpu_custom_call.1} parent=0
    #allocation2 [shape = 'u8[8192]{0}', space=vmem, size = 0x2000, scoped, tag = 'output window, operand 0']
    #allocation3 [shape = 's32[2]{0}', space=sflag, size = 0x8, scoped, tag = 'scoped memory for tpu_custom_call.1']
    #allocation4 [shape = 'u8[8192]{0}', space=vmem, size = 0x2000, scoped, tag = 'output window, operand 1']
    #allocation5 [shape = 's32[2]{0}', space=sflag, size = 0x8, scoped, tag = 'scoped memory for tpu_custom_call.1']
    %10 = vsyncpa [#allocation3], 0
    %s11 = scalar_lea.sflag [#allocation3], 1
    %12 = vsyncpa %s11, 0
    %13 = vsyncpa [#allocation5], 0
    %s14 = scalar_lea.sflag [#allocation5], 1
    %15 = vsyncpa %s14, 0
    loop: start=0, step=1, limit=4
    $region2: #{tpu_custom_call.1} parent=1 // loop_pre_header
      _
    $region3: #{tpu_custom_call.1} parent=1 // loop_header
      %s17 = sphi 0, %s21
      %p18 = scmp.ge.s32.totalorder %s17, 4
      %s27 = sphi 0, %s29
      %s30 = sphi 0, %s27
      %s31 = sphi 0, %s30
      %s47 = sphi 0, %s31
      %s53 = sphi 0, %s55
      %s56 = sphi 0, %s53
      %s57 = sphi 0, %s56
      %s73 = sphi 0, %s57
      %s79 = sphi 0, %s81
      %s82 = sphi 0, %s79
      %s83 = sphi 0, %s82
      %s99 = sphi 0, %s83
      %s105 = sphi 0, %s107
      %s108 = sphi 0, %s105
      %s109 = sphi 0, %s108
      %s125 = sphi 0, %s109
      %s131 = sphi 0, %s133
      %s134 = sphi 0, %s131
      %s135 = sphi 0, %s134
      %s151 = sphi 0, %s135
    $region4: #{tpu_custom_call.1} parent=1 // loop_header_branch
      %20 = sbr.rel (%p18) target = $region8
    $region5: #{tpu_custom_call.1} parent=1 // loop_body
      %s22 = ssub.s32 %s17, 1
      %s23 = ssub.s32 %s17, 2
      %s24 = sadd.s32 %s17, 1
      %s25 = ssub.s32 %s17, %s24
      %p26 = scmp.eq.s32.totalorder %s25, 0
      %s28 = sadd.s32 %s27, 1
      %s29 = scalar_select %p26, %s27, %s28
      %p32 = pneg %p26
      %p33 = scmp.eq.s32.totalorder %s17, 1
      %p34 = por %p32, %p33
      %p35 = scmp.ne.s32.totalorder %s27, %s30
      %p36 = scmp.eq.s32.totalorder %s17, 0
      %p37 = por %p35, %p36
      %p38 = scmp.ne.s32.totalorder %s27, %s30
      %p39 = scmp.eq.s32.totalorder %s22, 1
      %p40 = por %p38, %p39
      %p41 = scmp.ne.s32.totalorder %s30, %s31
      %p42 = scmp.eq.s32.totalorder %s22, 0
      %p43 = por %p41, %p42
      %p44 = scmp.ne.s32.totalorder %s30, %s31
      %p45 = scmp.eq.s32.totalorder %s23, 1
      %p46 = por %p44, %p45
      %p48 = scmp.ne.s32.totalorder %s31, %s47
      %p49 = scmp.eq.s32.totalorder %s23, 0
      %p50 = por %p48, %p49
      %s51 = ssub.s32 %s17, %s24
      %p52 = scmp.eq.s32.totalorder %s51, 0
      %s54 = sadd.s32 %s53, 1
      %s55 = scalar_select %p52, %s53, %s54
      %p58 = pneg %p52
      %p59 = scmp.eq.s32.totalorder %s17, 1
      %p60 = por %p58, %p59
      %p61 = scmp.ne.s32.totalorder %s53, %s56
      %p62 = scmp.eq.s32.totalorder %s17, 0
      %p63 = por %p61, %p62
      %p64 = scmp.ne.s32.totalorder %s53, %s56
      %p65 = scmp.eq.s32.totalorder %s22, 1
      %p66 = por %p64, %p65
      %p67 = scmp.ne.s32.totalorder %s56, %s57
      %p68 = scmp.eq.s32.totalorder %s22, 0
      %p69 = por %p67, %p68
      %p70 = scmp.ne.s32.totalorder %s56, %s57
      %p71 = scmp.eq.s32.totalorder %s23, 1
      %p72 = por %p70, %p71
      %p74 = scmp.ne.s32.totalorder %s57, %s73
      %p75 = scmp.eq.s32.totalorder %s23, 0
      %p76 = por %p74, %p75
      %s77 = ssub.s32 %s17, %s24
      %p78 = scmp.eq.s32.totalorder %s77, 0
      %s80 = sadd.s32 %s79, 1
      %s81 = scalar_select %p78, %s79, %s80
      %p84 = pneg %p78
      %p85 = scmp.eq.s32.totalorder %s17, 1
      %p86 = por %p84, %p85
      %p87 = scmp.ne.s32.totalorder %s79, %s82
      %p88 = scmp.eq.s32.totalorder %s17, 0
      %p89 = por %p87, %p88
      %p90 = scmp.ne.s32.totalorder %s79, %s82
      %p91 = scmp.eq.s32.totalorder %s22, 1
      %p92 = por %p90, %p91
      %p93 = scmp.ne.s32.totalorder %s82, %s83
      %p94 = scmp.eq.s32.totalorder %s22, 0
      %p95 = por %p93, %p94
      %p96 = scmp.ne.s32.totalorder %s82, %s83
      %p97 = scmp.eq.s32.totalorder %s23, 1
      %p98 = por %p96, %p97
      %p100 = scmp.ne.s32.totalorder %s83, %s99
      %p101 = scmp.eq.s32.totalorder %s23, 0
      %p102 = por %p100, %p101
      %s103 = ssub.s32 %s17, %s24
      %p104 = scmp.eq.s32.totalorder %s103, 0
      %s106 = sadd.s32 %s105, 1
      %s107 = scalar_select %p104, %s105, %s106
      %p110 = pneg %p104
      %p111 = scmp.eq.s32.totalorder %s17, 1
      %p112 = por %p110, %p111
      %p113 = scmp.ne.s32.totalorder %s105, %s108
      %p114 = scmp.eq.s32.totalorder %s17, 0
      %p115 = por %p113, %p114
      %p116 = scmp.ne.s32.totalorder %s105, %s108
      %p117 = scmp.eq.s32.totalorder %s22, 1
      %p118 = por %p116, %p117
      %p119 = scmp.ne.s32.totalorder %s108, %s109
      %p120 = scmp.eq.s32.totalorder %s22, 0
      %p121 = por %p119, %p120
      %p122 = scmp.ne.s32.totalorder %s108, %s109
      %p123 = scmp.eq.s32.totalorder %s23, 1
      %p124 = por %p122, %p123
      %p126 = scmp.ne.s32.totalorder %s109, %s125
      %p127 = scmp.eq.s32.totalorder %s23, 0
      %p128 = por %p126, %p127
      %s129 = ssub.s32 %s17, %s24
      %p130 = scmp.eq.s32.totalorder %s129, 0
      %s132 = sadd.s32 %s131, 1
      %s133 = scalar_select %p130, %s131, %s132
      %p136 = pneg %p130
      %p137 = scmp.eq.s32.totalorder %s17, 1
      %p138 = por %p136, %p137
      %p139 = scmp.ne.s32.totalorder %s131, %s134
      %p140 = scmp.eq.s32.totalorder %s17, 0
      %p141 = por %p139, %p140
      %p142 = scmp.ne.s32.totalorder %s131, %s134
      %p143 = scmp.eq.s32.totalorder %s22, 1
      %p144 = por %p142, %p143
      %p145 = scmp.ne.s32.totalorder %s134, %s135
      %p146 = scmp.eq.s32.totalorder %s22, 0
      %p147 = por %p145, %p146
      %p148 = scmp.ne.s32.totalorder %s134, %s135
      %p149 = scmp.eq.s32.totalorder %s23, 1
      %p150 = por %p148, %p149
      %p152 = scmp.ne.s32.totalorder %s135, %s151
      %p153 = scmp.eq.s32.totalorder %s23, 0
      %p154 = por %p152, %p153
      %p155 = scmp.le.s32.totalorder 1, %s17
      %p156 = scmp.lt.s32.totalorder %s17, 3
      %p157 = pnand %p155, %p156
      %p158 = pneg %p157
      // Predicated region
      $region9: #{tpu_custom_call.1} parent=5 // pred_check
        _
      $region10: #{tpu_custom_call.1} parent=5 // pred_check_branch
        %160 = sbr.rel (%p157) target = $region12
      $region11: #{tpu_custom_call.1} parent=5 // pred_region
        %s161 = ssub.s32 %s17, 1
      $region12: #{tpu_custom_call.1} parent=5 // pred_fallthru
        _
      %p162 = scmp.lt.s32.totalorder %s17, 2
      // Predicated region
      $region13: #{tpu_custom_call.1} parent=5 // pred_check
        %p163 = pneg %p162
      $region14: #{tpu_custom_call.1} parent=5 // pred_check_branch
        %165 = sbr.rel (%p163) target = $region16
      $region15: #{tpu_custom_call.1} parent=5 // pred_region
        // Predicated region
        $region17: #{tpu_custom_call.1} parent=15 // pred_check
          %p166 = pneg %p37
        $region18: #{tpu_custom_call.1} parent=15 // pred_check_branch
          %168 = sbr.rel (%p166) target = $region20
        $region19: #{tpu_custom_call.1} parent=15 // pred_region
          %p169 = scmp.lt.s32.totalorder %s17, 1
          %s170 = scalar_select %p169, %s17, 1
          %s171 = smul.addr %s170, 8
          %s172 = scalar_lea.vmem %s0, %s171
        $region20: #{tpu_custom_call.1} parent=15 // pred_fallthru
          _
        // Predicated region
        $region21: #{tpu_custom_call.1} parent=15 // pred_check
          %p173 = pneg %p63
        $region22: #{tpu_custom_call.1} parent=15 // pred_check_branch
          %175 = sbr.rel (%p173) target = $region24
        $region23: #{tpu_custom_call.1} parent=15 // pred_region
          %s176 = smul.u32 8, %s17
          %p177 = scmp.lt.s32.totalorder %s176, 15
          %s178 = scalar_select %p177, %s176, 15
          %s179 = smul.addr %s178, 4
          %s180 = smul.addr %s179, 8
          %s181 = scalar_lea.vmem %s1, %s180
          %s182 = smul.u32 8, %s17
        $region24: #{tpu_custom_call.1} parent=15 // pred_fallthru
          _
        // Predicated region
        $region25: #{tpu_custom_call.1} parent=15 // pred_check
          %p183 = pneg %p89
        $region26: #{tpu_custom_call.1} parent=15 // pred_check_branch
          %185 = sbr.rel (%p183) target = $region28
        $region27: #{tpu_custom_call.1} parent=15 // pred_region
          %s186 = smul.u32 8, %s17
          %p187 = scmp.lt.s32.totalorder %s186, 15
          %s188 = scalar_select %p187, %s186, 15
          %s189 = smul.addr %s188, 2
          %s190 = smul.addr %s189, 8
          %s191 = scalar_lea.vmem %s2, %s190
          %s192 = smul.u32 8, %s17
        $region28: #{tpu_custom_call.1} parent=15 // pred_fallthru
          _
      $region16: #{tpu_custom_call.1} parent=5 // pred_fallthru
        _
      %p193 = scmp.le.s32.totalorder 1, %s17
      %p194 = scmp.lt.s32.totalorder %s17, 3
      %p195 = pnand %p193, %p194
      %p196 = pneg %p195
      // Predicated region
      $region29: #{tpu_custom_call.1} parent=5 // pred_check
        _
      $region30: #{tpu_custom_call.1} parent=5 // pred_check_branch
        %198 = sbr.rel (%p195) target = $region32
      $region31: #{tpu_custom_call.1} parent=5 // pred_region
        %s199 = ssub.s32 %s17, 1
        %p200 = scmp.lt.s32.totalorder %s22, 1
        %s201 = scalar_select %p200, %s22, 1
        %s202 = smul.addr %s201, 8
        %s203 = scalar_lea.vmem %s0, %s202
        %p204 = pneg %p43
        %p205 = pneg %p40
        %s206 = smul.u32 8, %s22
        %p207 = scmp.lt.s32.totalorder %s206, 15
        %s208 = scalar_select %p207, %s206, 15
        %s209 = smul.addr %s208, 4
        %s210 = smul.addr %s209, 8
        %s211 = scalar_lea.vmem %s1, %s210
        %p212 = pneg %p69
        %p213 = pneg %p66
        %s214 = smul.u32 8, %s22
        %p215 = scmp.lt.s32.totalorder %s214, 15
        %s216 = scalar_select %p215, %s214, 15
        %s217 = smul.addr %s216, 2
        %s218 = smul.addr %s217, 8
        %s219 = scalar_lea.vmem %s2, %s218
        %p220 = pneg %p95
        %p221 = pneg %p92
        %p222 = pneg %p121
        %p223 = pneg %p118
        %s224 = sand.u32 %s108, 1
        %s225 = scalar_lea.sflag [#allocation3], %s224
        %s226 = sand.u32 %s108, 1
        %s227 = smul.addr %s226, 8
        %s228 = scalar_lea.vmem [#allocation2], %s227
        %p229 = pneg %p147
        %p230 = pneg %p144
        %s231 = sand.u32 %s134, 1
        %s232 = scalar_lea.sflag [#allocation5], %s231
        %s233 = sand.u32 %s134, 1
        %s234 = smul.addr %s233, 8
        %s235 = scalar_lea.vmem [#allocation4], %s234
        %p236 = scmp.lt.s32.totalorder %s22, 1
        %s237 = scalar_select %p236, %s22, 1
        %s238 = smul.addr %s237, 8
        %s239 = scalar_lea.vmem %s0, %s238
        %s240 = smul.u32 8, %s22
        %p241 = scmp.lt.s32.totalorder %s240, 15
        %s242 = scalar_select %p241, %s240, 15
        %s243 = smul.addr %s242, 4
        %s244 = smul.addr %s243, 8
        %s245 = scalar_lea.vmem %s1, %s244
        %s246 = smul.u32 8, %s22
        %s247 = smul.u32 8, %s22
        %p248 = scmp.lt.s32.totalorder %s247, 15
        %s249 = scalar_select %p248, %s247, 15
        %s250 = smul.addr %s249, 2
        %s251 = smul.addr %s250, 8
        %s252 = scalar_lea.vmem %s2, %s251
        %s253 = smul.u32 8, %s22
        %v254 = vld [vmem:[%s239] sm:$0xff]
        %v255 = vld [vmem:[%s245] sm:$0xff]
        %v256 = vld [vmem:[%s245 + $0x8] sm:$0xff]
        %v257 = vld [vmem:[%s245 + $0x10] sm:$0xff]
        %v258 = vld [vmem:[%s245 + $0x18] sm:$0xff]
        %v259 = vld [vmem:[%s245 + $0x20] sm:$0xff]
        %v260 = vld [vmem:[%s245 + $0x28] sm:$0xff]
        %v261 = vld [vmem:[%s245 + $0x30] sm:$0xff]
        %v262 = vld [vmem:[%s245 + $0x38] sm:$0xff]
        %v263 = vld [vmem:[%s245 + $0x40] sm:$0xff]
        %v264 = vld [vmem:[%s245 + $0x48] sm:$0xff]
        %v265 = vld [vmem:[%s245 + $0x50] sm:$0xff]
        %v266 = vld [vmem:[%s245 + $0x58] sm:$0xff]
        %v267 = vld [vmem:[%s245 + $0x60] sm:$0xff]
        %v268 = vld [vmem:[%s245 + $0x68] sm:$0xff]
        %v269 = vld [vmem:[%s245 + $0x70] sm:$0xff]
        %v270 = vld [vmem:[%s245 + $0x78] sm:$0xff]
        %v271 = vld [vmem:[%s245 + $0x80] sm:$0xff]
        %v272 = vld [vmem:[%s245 + $0x88] sm:$0xff]
        %v273 = vld [vmem:[%s245 + $0x90] sm:$0xff]
        %v274 = vld [vmem:[%s245 + $0x98] sm:$0xff]
        %v275 = vld [vmem:[%s245 + $0xa0] sm:$0xff]
        %v276 = vld [vmem:[%s245 + $0xa8] sm:$0xff]
        %v277 = vld [vmem:[%s245 + $0xb0] sm:$0xff]
        %v278 = vld [vmem:[%s245 + $0xb8] sm:$0xff]
        %v279 = vld [vmem:[%s245 + $0xc0] sm:$0xff]
        %v280 = vld [vmem:[%s245 + $0xc8] sm:$0xff]
        %v281 = vld [vmem:[%s245 + $0xd0] sm:$0xff]
        %v282 = vld [vmem:[%s245 + $0xd8] sm:$0xff]
        %v283 = vld [vmem:[%s245 + $0xe0] sm:$0xff]
        %v284 = vld [vmem:[%s245 + $0xe8] sm:$0xff]
        %v285 = vld [vmem:[%s245 + $0xf0] sm:$0xff]
        %v286 = vld [vmem:[%s245 + $0xf8] sm:$0xff]
        %v287 = vld [vmem:[%s252] sm:$0xff]
        %v288 = vld [vmem:[%s252 + $0x8] sm:$0xff]
        %v289 = vld [vmem:[%s252 + $0x10] sm:$0xff]
        %v290 = vld [vmem:[%s252 + $0x18] sm:$0xff]
        %v291 = vld [vmem:[%s252 + $0x20] sm:$0xff]
        %v292 = vld [vmem:[%s252 + $0x28] sm:$0xff]
        %v293 = vld [vmem:[%s252 + $0x30] sm:$0xff]
        %v294 = vld [vmem:[%s252 + $0x38] sm:$0xff]
        %v295 = vld [vmem:[%s252 + $0x40] sm:$0xff]
        %v296 = vld [vmem:[%s252 + $0x48] sm:$0xff]
        %v297 = vld [vmem:[%s252 + $0x50] sm:$0xff]
        %v298 = vld [vmem:[%s252 + $0x58] sm:$0xff]
        %v299 = vld [vmem:[%s252 + $0x60] sm:$0xff]
        %v300 = vld [vmem:[%s252 + $0x68] sm:$0xff]
        %v301 = vld [vmem:[%s252 + $0x70] sm:$0xff]
        %v302 = vld [vmem:[%s252 + $0x78] sm:$0xff]
        %v304 = vcombine.high %v254, %v254
        %v306 = vunpack.c.l.s4 1966171168
        %v307 = vunpack.c.0.s8 %v306
        %v308 = vlaneseq
        %v309 = vshrl.u32 %v308, 7
        %v310 = vsub.s32 %v307, %v309
        %v311 = vrot.slane %v254, %v310
        %v313 = vunpack.c.l.s4 1966171168
        %v314 = vunpack.c.0.s8 %v313
        %v315 = vlaneseq
        %v316 = vshrl.u32 %v315, 7
        %v317 = vsub.s32 %v314, %v316
        %v318 = vrot.slane %v304, %v317
        %v319 = vcombine.high %v311, %v311
        %v320 = vcombine.high %v318, %v318
        %v322 = vunpack.c.l.s4 1966171168
        %v323 = vunpack.c.0.s8 %v322
        %v324 = vlaneseq
        %v325 = vshrl.u32 %v324, 7
        %v326 = vsub.s32 %v323, %v325
        %v327 = vrot.slane %v311, %v326
        %v329 = vunpack.c.l.s4 1966171168
        %v330 = vunpack.c.0.s8 %v329
        %v331 = vlaneseq
        %v332 = vshrl.u32 %v331, 7
        %v333 = vsub.s32 %v330, %v332
        %v334 = vrot.slane %v318, %v333
        %v336 = vunpack.c.l.s4 1966171168
        %v337 = vunpack.c.0.s8 %v336
        %v338 = vlaneseq
        %v339 = vshrl.u32 %v338, 7
        %v340 = vsub.s32 %v337, %v339
        %v341 = vrot.slane %v319, %v340
        %v343 = vunpack.c.l.s4 1966171168
        %v344 = vunpack.c.0.s8 %v343
        %v345 = vlaneseq
        %v346 = vshrl.u32 %v345, 7
        %v347 = vsub.s32 %v344, %v346
        %v348 = vrot.slane %v320, %v347
        %v349 = vcombine.high %v327, %v327
        %v350 = vcombine.high %v334, %v334
        %v351 = vcombine.high %v341, %v341
        %v352 = vcombine.high %v348, %v348
        %vm353 = vcmask 261120
        %v354 = vsel %vm353, %v327, 0
        %356 = vmatprep.subr.mxu0 0.0
        %357 = vmatpush1.msra.mxu0 %v255
        %358 = vmatprep.subr.mxu0 0.0
        %359 = vmatpush1.msra.mxu0 %v256
        %360 = vmatprep.subr.mxu0 0.0
        %361 = vmatpush1.msra.mxu0 %v257
        %362 = vmatprep.subr.mxu0 0.0
        %363 = vmatpush1.msra.mxu0 %v258
        %364 = vmatprep.subr.mxu0 0.0
        %365 = vmatpush1.msra.mxu0 0.0
        %366 = vmatprep.subr.mxu0 0.0
        %367 = vmatpush1.msra.mxu0 0.0
        %368 = vmatprep.subr.mxu0 0.0
        %369 = vmatpush1.msra.mxu0 0.0
        %370 = vmatprep.subr.mxu0 0.0
        %371 = vmatpush1.msra.mxu0 0.0
        %372 = vmatprep.subr.mxu0 0.0
        %373 = vmatpush1.msra.mxu0 0.0
        %374 = vmatprep.subr.mxu0 0.0
        %375 = vmatpush1.msra.mxu0 0.0
        %376 = vmatprep.subr.mxu0 0.0
        %377 = vmatpush1.msra.mxu0 0.0
        %378 = vmatprep.subr.mxu0 0.0
        %379 = vmatpush1.msra.mxu0 0.0
        %380 = vmatprep.subr.mxu0 0.0
        %381 = vmatpush1.msra.mxu0 0.0
        %382 = vmatprep.subr.mxu0 0.0
        %383 = vmatpush1.msra.mxu0 0.0
        %384 = vmatprep.subr.mxu0 0.0
        %385 = vmatpush1.msra.mxu0 0.0
        %386 = vmatprep.subr.mxu0 0.0
        %387 = vmatpush1.msra.mxu0 0.0
        %388 = vmatprep.subr.mxu0 0.0
        %389 = vmatpush1.msra.mxu0 0.0
        %390 = vmatprep.subr.mxu0 0.0
        %391 = vmatpush1.msra.mxu0 0.0
        %392 = vmatprep.subr.mxu0 0.0
        %393 = vmatpush1.msra.mxu0 0.0
        %394 = vmatprep.subr.mxu0 0.0
        %395 = vmatpush1.msra.mxu0 0.0
        %396 = vmatprep.subr.mxu0 0.0
        %397 = vmatpush1.msra.mxu0 0.0
        %398 = vmatprep.subr.mxu0 0.0
        %399 = vmatpush1.msra.mxu0 0.0
        %400 = vmatprep.subr.mxu0 0.0
        %401 = vmatpush1.msra.mxu0 0.0
        %402 = vmatprep.subr.mxu0 0.0
        %403 = vmatpush1.msra.mxu0 0.0
        %404 = vmatprep.subr.mxu0 0.0
        %405 = vmatpush1.msra.mxu0 0.0
        %406 = vmatprep.subr.mxu0 0.0
        %407 = vmatpush1.msra.mxu0 0.0
        %408 = vmatprep.subr.mxu0 0.0
        %409 = vmatpush1.msra.mxu0 0.0
        %410 = vmatprep.subr.mxu0 0.0
        %411 = vmatpush1.msra.mxu0 0.0
        %412 = vmatprep.subr.mxu0 0.0
        %413 = vmatpush1.msra.mxu0 0.0
        %414 = vmatprep.subr.mxu0 0.0
        %415 = vmatpush1.msra.mxu0 0.0
        %416 = vmatprep.subr.mxu0 0.0
        %417 = vmatpush1.msra.mxu0 0.0
        %418 = vmatprep.subr.mxu0 0.0
        %419 = vmatpush1.msra.mxu0 0.0
        %420 = vmatprep.mubr.f32.mxu0 0.0
        %421 = vmatmul.mubr.f32.gmra.mrb[0].mxu0 %v354
        %v422 = vpop.f32.mrb[0].mxu0
        %v423 = vadd.f32 0.0, %v422
        %v424 = vpop.f32.mrb[0].mxu0
        %425 = vdwg.mxu0
        %v426 = vsel %vm353, %v341, 0
        %428 = vmatprep.subr.mxu0 0.0
        %429 = vmatpush1.msra.mxu0 %v259
        %430 = vmatprep.subr.mxu0 0.0
        %431 = vmatpush1.msra.mxu0 %v260
        %432 = vmatprep.subr.mxu0 0.0
        %433 = vmatpush1.msra.mxu0 %v261
        %434 = vmatprep.subr.mxu0 0.0
        %435 = vmatpush1.msra.mxu0 %v262
        %436 = vmatprep.subr.mxu0 0.0
        %437 = vmatpush1.msra.mxu0 0.0
        %438 = vmatprep.subr.mxu0 0.0
        %439 = vmatpush1.msra.mxu0 0.0
        %440 = vmatprep.subr.mxu0 0.0
        %441 = vmatpush1.msra.mxu0 0.0
        %442 = vmatprep.subr.mxu0 0.0
        %443 = vmatpush1.msra.mxu0 0.0
        %444 = vmatprep.subr.mxu0 0.0
        %445 = vmatpush1.msra.mxu0 0.0
        %446 = vmatprep.subr.mxu0 0.0
        %447 = vmatpush1.msra.mxu0 0.0
        %448 = vmatprep.subr.mxu0 0.0
        %449 = vmatpush1.msra.mxu0 0.0
        %450 = vmatprep.subr.mxu0 0.0
        %451 = vmatpush1.msra.mxu0 0.0
        %452 = vmatprep.subr.mxu0 0.0
        %453 = vmatpush1.msra.mxu0 0.0
        %454 = vmatprep.subr.mxu0 0.0
        %455 = vmatpush1.msra.mxu0 0.0
        %456 = vmatprep.subr.mxu0 0.0
        %457 = vmatpush1.msra.mxu0 0.0
        %458 = vmatprep.subr.mxu0 0.0
        %459 = vmatpush1.msra.mxu0 0.0
        %460 = vmatprep.subr.mxu0 0.0
        %461 = vmatpush1.msra.mxu0 0.0
        %462 = vmatprep.subr.mxu0 0.0
        %463 = vmatpush1.msra.mxu0 0.0
        %464 = vmatprep.subr.mxu0 0.0
        %465 = vmatpush1.msra.mxu0 0.0
        %466 = vmatprep.subr.mxu0 0.0
        %467 = vmatpush1.msra.mxu0 0.0
        %468 = vmatprep.subr.mxu0 0.0
        %469 = vmatpush1.msra.mxu0 0.0
        %470 = vmatprep.subr.mxu0 0.0
        %471 = vmatpush1.msra.mxu0 0.0
        %472 = vmatprep.subr.mxu0 0.0
        %473 = vmatpush1.msra.mxu0 0.0
        %474 = vmatprep.subr.mxu0 0.0
        %475 = vmatpush1.msra.mxu0 0.0
        %476 = vmatprep.subr.mxu0 0.0
        %477 = vmatpush1.msra.mxu0 0.0
        %478 = vmatprep.subr.mxu0 0.0
        %479 = vmatpush1.msra.mxu0 0.0
        %480 = vmatprep.subr.mxu0 0.0
        %481 = vmatpush1.msra.mxu0 0.0
        %482 = vmatprep.subr.mxu0 0.0
        %483 = vmatpush1.msra.mxu0 0.0
        %484 = vmatprep.subr.mxu0 0.0
        %485 = vmatpush1.msra.mxu0 0.0
        %486 = vmatprep.subr.mxu0 0.0
        %487 = vmatpush1.msra.mxu0 0.0
        %488 = vmatprep.subr.mxu0 0.0
        %489 = vmatpush1.msra.mxu0 0.0
        %490 = vmatprep.subr.mxu0 0.0
        %491 = vmatpush1.msra.mxu0 0.0
        %492 = vmatprep.mubr.f32.mxu0 0.0
        %493 = vmatmul.mubr.f32.gmra.mrb[0].mxu0 %v426
        %v494 = vpop.f32.mrb[0].mxu0
        %v495 = vadd.f32 0.0, %v494
        %v496 = vpop.f32.mrb[0].mxu0
        %497 = vdwg.mxu0
        %v498 = vsel %vm353, %v349, 0
        %500 = vmatprep.subr.mxu0 0.0
        %501 = vmatpush1.msra.mxu0 %v263
        %502 = vmatprep.subr.mxu0 0.0
        %503 = vmatpush1.msra.mxu0 %v264
        %504 = vmatprep.subr.mxu0 0.0
        %505 = vmatpush1.msra.mxu0 %v265
        %506 = vmatprep.subr.mxu0 0.0
        %507 = vmatpush1.msra.mxu0 %v266
        %508 = vmatprep.subr.mxu0 0.0
        %509 = vmatpush1.msra.mxu0 0.0
        %510 = vmatprep.subr.mxu0 0.0
        %511 = vmatpush1.msra.mxu0 0.0
        %512 = vmatprep.subr.mxu0 0.0
        %513 = vmatpush1.msra.mxu0 0.0
        %514 = vmatprep.subr.mxu0 0.0
        %515 = vmatpush1.msra.mxu0 0.0
        %516 = vmatprep.subr.mxu0 0.0
        %517 = vmatpush1.msra.mxu0 0.0
        %518 = vmatprep.subr.mxu0 0.0
        %519 = vmatpush1.msra.mxu0 0.0
        %520 = vmatprep.subr.mxu0 0.0
        %521 = vmatpush1.msra.mxu0 0.0
        %522 = vmatprep.subr.mxu0 0.0
        %523 = vmatpush1.msra.mxu0 0.0
        %524 = vmatprep.subr.mxu0 0.0
        %525 = vmatpush1.msra.mxu0 0.0
        %526 = vmatprep.subr.mxu0 0.0
        %527 = vmatpush1.msra.mxu0 0.0
        %528 = vmatprep.subr.mxu0 0.0
        %529 = vmatpush1.msra.mxu0 0.0
        %530 = vmatprep.subr.mxu0 0.0
        %531 = vmatpush1.msra.mxu0 0.0
        %532 = vmatprep.subr.mxu0 0.0
        %533 = vmatpush1.msra.mxu0 0.0
        %534 = vmatprep.subr.mxu0 0.0
        %535 = vmatpush1.msra.mxu0 0.0
        %536 = vmatprep.subr.mxu0 0.0
        %537 = vmatpush1.msra.mxu0 0.0
        %538 = vmatprep.subr.mxu0 0.0
        %539 = vmatpush1.msra.mxu0 0.0
        %540 = vmatprep.subr.mxu0 0.0
        %541 = vmatpush1.msra.mxu0 0.0
        %542 = vmatprep.subr.mxu0 0.0
        %543 = vmatpush1.msra.mxu0 0.0
        %544 = vmatprep.subr.mxu0 0.0
        %545 = vmatpush1.msra.mxu0 0.0
        %546 = vmatprep.subr.mxu0 0.0
        %547 = vmatpush1.msra.mxu0 0.0
        %548 = vmatprep.subr.mxu0 0.0
        %549 = vmatpush1.msra.mxu0 0.0
        %550 = vmatprep.subr.mxu0 0.0
        %551 = vmatpush1.msra.mxu0 0.0
        %552 = vmatprep.subr.mxu0 0.0
        %553 = vmatpush1.msra.mxu0 0.0
        %554 = vmatprep.subr.mxu0 0.0
        %555 = vmatpush1.msra.mxu0 0.0
        %556 = vmatprep.subr.mxu0 0.0
        %557 = vmatpush1.msra.mxu0 0.0
        %558 = vmatprep.subr.mxu0 0.0
        %559 = vmatpush1.msra.mxu0 0.0
        %560 = vmatprep.subr.mxu0 0.0
        %561 = vmatpush1.msra.mxu0 0.0
        %562 = vmatprep.subr.mxu0 0.0
        %563 = vmatpush1.msra.mxu0 0.0
        %564 = vmatprep.mubr.f32.mxu0 0.0
        %565 = vmatmul.mubr.f32.gmra.mrb[0].mxu0 %v498
        %v566 = vpop.f32.mrb[0].mxu0
        %v567 = vadd.f32 0.0, %v566
        %v568 = vpop.f32.mrb[0].mxu0
        %569 = vdwg.mxu0
        %v570 = vsel %vm353, %v351, 0
        %572 = vmatprep.subr.mxu0 0.0
        %573 = vmatpush1.msra.mxu0 %v267
        %574 = vmatprep.subr.mxu0 0.0
        %575 = vmatpush1.msra.mxu0 %v268
        %576 = vmatprep.subr.mxu0 0.0
        %577 = vmatpush1.msra.mxu0 %v269
        %578 = vmatprep.subr.mxu0 0.0
        %579 = vmatpush1.msra.mxu0 %v270
        %580 = vmatprep.subr.mxu0 0.0
        %581 = vmatpush1.msra.mxu0 0.0
        %582 = vmatprep.subr.mxu0 0.0
        %583 = vmatpush1.msra.mxu0 0.0
        %584 = vmatprep.subr.mxu0 0.0
        %585 = vmatpush1.msra.mxu0 0.0
        %586 = vmatprep.subr.mxu0 0.0
        %587 = vmatpush1.msra.mxu0 0.0
        %588 = vmatprep.subr.mxu0 0.0
        %589 = vmatpush1.msra.mxu0 0.0
        %590 = vmatprep.subr.mxu0 0.0
        %591 = vmatpush1.msra.mxu0 0.0
        %592 = vmatprep.subr.mxu0 0.0
        %593 = vmatpush1.msra.mxu0 0.0
        %594 = vmatprep.subr.mxu0 0.0
        %595 = vmatpush1.msra.mxu0 0.0
        %596 = vmatprep.subr.mxu0 0.0
        %597 = vmatpush1.msra.mxu0 0.0
        %598 = vmatprep.subr.mxu0 0.0
        %599 = vmatpush1.msra.mxu0 0.0
        %600 = vmatprep.subr.mxu0 0.0
        %601 = vmatpush1.msra.mxu0 0.0
        %602 = vmatprep.subr.mxu0 0.0
        %603 = vmatpush1.msra.mxu0 0.0
        %604 = vmatprep.subr.mxu0 0.0
        %605 = vmatpush1.msra.mxu0 0.0
        %606 = vmatprep.subr.mxu0 0.0
        %607 = vmatpush1.msra.mxu0 0.0
        %608 = vmatprep.subr.mxu0 0.0
        %609 = vmatpush1.msra.mxu0 0.0
        %610 = vmatprep.subr.mxu0 0.0
        %611 = vmatpush1.msra.mxu0 0.0
        %612 = vmatprep.subr.mxu0 0.0
        %613 = vmatpush1.msra.mxu0 0.0
        %614 = vmatprep.subr.mxu0 0.0
        %615 = vmatpush1.msra.mxu0 0.0
        %616 = vmatprep.subr.mxu0 0.0
        %617 = vmatpush1.msra.mxu0 0.0
        %618 = vmatprep.subr.mxu0 0.0
        %619 = vmatpush1.msra.mxu0 0.0
        %620 = vmatprep.subr.mxu0 0.0
        %621 = vmatpush1.msra.mxu0 0.0
        %622 = vmatprep.subr.mxu0 0.0
        %623 = vmatpush1.msra.mxu0 0.0
        %624 = vmatprep.subr.mxu0 0.0
        %625 = vmatpush1.msra.mxu0 0.0
        %626 = vmatprep.subr.mxu0 0.0
        %627 = vmatpush1.msra.mxu0 0.0
        %628 = vmatprep.subr.mxu0 0.0
        %629 = vmatpush1.msra.mxu0 0.0
        %630 = vmatprep.subr.mxu0 0.0
        %631 = vmatpush1.msra.mxu0 0.0
        %632 = vmatprep.subr.mxu0 0.0
        %633 = vmatpush1.msra.mxu0 0.0
        %634 = vmatprep.subr.mxu0 0.0
        %635 = vmatpush1.msra.mxu0 0.0
        %636 = vmatprep.mubr.f32.mxu0 0.0
        %637 = vmatmul.mubr.f32.gmra.mrb[0].mxu0 %v570
        %v638 = vpop.f32.mrb[0].mxu0
        %v639 = vadd.f32 0.0, %v638
        %v640 = vpop.f32.mrb[0].mxu0
        %641 = vdwg.mxu0
        %v642 = vsel %vm353, %v334, 0
        %644 = vmatprep.subr.mxu0 0.0
        %645 = vmatpush1.msra.mxu0 %v271
        %646 = vmatprep.subr.mxu0 0.0
        %647 = vmatpush1.msra.mxu0 %v272
        %648 = vmatprep.subr.mxu0 0.0
        %649 = vmatpush1.msra.mxu0 %v273
        %650 = vmatprep.subr.mxu0 0.0
        %651 = vmatpush1.msra.mxu0 %v274
        %652 = vmatprep.subr.mxu0 0.0
        %653 = vmatpush1.msra.mxu0 0.0
        %654 = vmatprep.subr.mxu0 0.0
        %655 = vmatpush1.msra.mxu0 0.0
        %656 = vmatprep.subr.mxu0 0.0
        %657 = vmatpush1.msra.mxu0 0.0
        %658 = vmatprep.subr.mxu0 0.0
        %659 = vmatpush1.msra.mxu0 0.0
        %660 = vmatprep.subr.mxu0 0.0
        %661 = vmatpush1.msra.mxu0 0.0
        %662 = vmatprep.subr.mxu0 0.0
        %663 = vmatpush1.msra.mxu0 0.0
        %664 = vmatprep.subr.mxu0 0.0
        %665 = vmatpush1.msra.mxu0 0.0
        %666 = vmatprep.subr.mxu0 0.0
        %667 = vmatpush1.msra.mxu0 0.0
        %668 = vmatprep.subr.mxu0 0.0
        %669 = vmatpush1.msra.mxu0 0.0
        %670 = vmatprep.subr.mxu0 0.0
        %671 = vmatpush1.msra.mxu0 0.0
        %672 = vmatprep.subr.mxu0 0.0
        %673 = vmatpush1.msra.mxu0 0.0
        %674 = vmatprep.subr.mxu0 0.0
        %675 = vmatpush1.msra.mxu0 0.0
        %676 = vmatprep.subr.mxu0 0.0
        %677 = vmatpush1.msra.mxu0 0.0
        %678 = vmatprep.subr.mxu0 0.0
        %679 = vmatpush1.msra.mxu0 0.0
        %680 = vmatprep.subr.mxu0 0.0
        %681 = vmatpush1.msra.mxu0 0.0
        %682 = vmatprep.subr.mxu0 0.0
        %683 = vmatpush1.msra.mxu0 0.0
        %684 = vmatprep.subr.mxu0 0.0
        %685 = vmatpush1.msra.mxu0 0.0
        %686 = vmatprep.subr.mxu0 0.0
        %687 = vmatpush1.msra.mxu0 0.0
        %688 = vmatprep.subr.mxu0 0.0
        %689 = vmatpush1.msra.mxu0 0.0
        %690 = vmatprep.subr.mxu0 0.0
        %691 = vmatpush1.msra.mxu0 0.0
        %692 = vmatprep.subr.mxu0 0.0
        %693 = vmatpush1.msra.mxu0 0.0
        %694 = vmatprep.subr.mxu0 0.0
        %695 = vmatpush1.msra.mxu0 0.0
        %696 = vmatprep.subr.mxu0 0.0
        %697 = vmatpush1.msra.mxu0 0.0
        %698 = vmatprep.subr.mxu0 0.0
        %699 = vmatpush1.msra.mxu0 0.0
        %700 = vmatprep.subr.mxu0 0.0
        %701 = vmatpush1.msra.mxu0 0.0
        %702 = vmatprep.subr.mxu0 0.0
        %703 = vmatpush1.msra.mxu0 0.0
        %704 = vmatprep.subr.mxu0 0.0
        %705 = vmatpush1.msra.mxu0 0.0
        %706 = vmatprep.subr.mxu0 0.0
        %707 = vmatpush1.msra.mxu0 0.0
        %708 = vmatprep.mubr.f32.mxu0 0.0
        %709 = vmatmul.mubr.f32.gmra.mrb[0].mxu0 %v642
        %v710 = vpop.f32.mrb[0].mxu0
        %v711 = vadd.f32 0.0, %v710
        %v712 = vpop.f32.mrb[0].mxu0
        %713 = vdwg.mxu0
        %v714 = vsel %vm353, %v348, 0
        %716 = vmatprep.subr.mxu0 0.0
        %717 = vmatpush1.msra.mxu0 %v275
        %718 = vmatprep.subr.mxu0 0.0
        %719 = vmatpush1.msra.mxu0 %v276
        %720 = vmatprep.subr.mxu0 0.0
        %721 = vmatpush1.msra.mxu0 %v277
        %722 = vmatprep.subr.mxu0 0.0
        %723 = vmatpush1.msra.mxu0 %v278
        %724 = vmatprep.subr.mxu0 0.0
        %725 = vmatpush1.msra.mxu0 0.0
        %726 = vmatprep.subr.mxu0 0.0
        %727 = vmatpush1.msra.mxu0 0.0
        %728 = vmatprep.subr.mxu0 0.0
        %729 = vmatpush1.msra.mxu0 0.0
        %730 = vmatprep.subr.mxu0 0.0
        %731 = vmatpush1.msra.mxu0 0.0
        %732 = vmatprep.subr.mxu0 0.0
        %733 = vmatpush1.msra.mxu0 0.0
        %734 = vmatprep.subr.mxu0 0.0
        %735 = vmatpush1.msra.mxu0 0.0
        %736 = vmatprep.subr.mxu0 0.0
        %737 = vmatpush1.msra.mxu0 0.0
        %738 = vmatprep.subr.mxu0 0.0
        %739 = vmatpush1.msra.mxu0 0.0
        %740 = vmatprep.subr.mxu0 0.0
        %741 = vmatpush1.msra.mxu0 0.0
        %742 = vmatprep.subr.mxu0 0.0
        %743 = vmatpush1.msra.mxu0 0.0
        %744 = vmatprep.subr.mxu0 0.0
        %745 = vmatpush1.msra.mxu0 0.0
        %746 = vmatprep.subr.mxu0 0.0
        %747 = vmatpush1.msra.mxu0 0.0
        %748 = vmatprep.subr.mxu0 0.0
        %749 = vmatpush1.msra.mxu0 0.0
        %750 = vmatprep.subr.mxu0 0.0
        %751 = vmatpush1.msra.mxu0 0.0
        %752 = vmatprep.subr.mxu0 0.0
        %753 = vmatpush1.msra.mxu0 0.0
        %754 = vmatprep.subr.mxu0 0.0
        %755 = vmatpush1.msra.mxu0 0.0
        %756 = vmatprep.subr.mxu0 0.0
        %757 = vmatpush1.msra.mxu0 0.0
        %758 = vmatprep.subr.mxu0 0.0
        %759 = vmatpush1.msra.mxu0 0.0
        %760 = vmatprep.subr.mxu0 0.0
        %761 = vmatpush1.msra.mxu0 0.0
        %762 = vmatprep.subr.mxu0 0.0
        %763 = vmatpush1.msra.mxu0 0.0
        %764 = vmatprep.subr.mxu0 0.0
        %765 = vmatpush1.msra.mxu0 0.0
        %766 = vmatprep.subr.mxu0 0.0
        %767 = vmatpush1.msra.mxu0 0.0
        %768 = vmatprep.subr.mxu0 0.0
        %769 = vmatpush1.msra.mxu0 0.0
        %770 = vmatprep.subr.mxu0 0.0
        %771 = vmatpush1.msra.mxu0 0.0
        %772 = vmatprep.subr.mxu0 0.0
        %773 = vmatpush1.msra.mxu0 0.0
        %774 = vmatprep.subr.mxu0 0.0
        %775 = vmatpush1.msra.mxu0 0.0
        %776 = vmatprep.subr.mxu0 0.0
        %777 = vmatpush1.msra.mxu0 0.0
        %778 = vmatprep.subr.mxu0 0.0
        %779 = vmatpush1.msra.mxu0 0.0
        %780 = vmatprep.mubr.f32.mxu0 0.0
        %781 = vmatmul.mubr.f32.gmra.mrb[0].mxu0 %v714
        %v782 = vpop.f32.mrb[0].mxu0
        %v783 = vadd.f32 0.0, %v782
        %v784 = vpop.f32.mrb[0].mxu0
        %785 = vdwg.mxu0
        %v786 = vsel %vm353, %v350, 0
        %788 = vmatprep.subr.mxu0 0.0
        %789 = vmatpush1.msra.mxu0 %v279
        %790 = vmatprep.subr.mxu0 0.0
        %791 = vmatpush1.msra.mxu0 %v280
        %792 = vmatprep.subr.mxu0 0.0
        %793 = vmatpush1.msra.mxu0 %v281
        %794 = vmatprep.subr.mxu0 0.0
        %795 = vmatpush1.msra.mxu0 %v282
        %796 = vmatprep.subr.mxu0 0.0
        %797 = vmatpush1.msra.mxu0 0.0
        %798 = vmatprep.subr.mxu0 0.0
        %799 = vmatpush1.msra.mxu0 0.0
        %800 = vmatprep.subr.mxu0 0.0
        %801 = vmatpush1.msra.mxu0 0.0
        %802 = vmatprep.subr.mxu0 0.0
        %803 = vmatpush1.msra.mxu0 0.0
        %804 = vmatprep.subr.mxu0 0.0
        %805 = vmatpush1.msra.mxu0 0.0
        %806 = vmatprep.subr.mxu0 0.0
        %807 = vmatpush1.msra.mxu0 0.0
        %808 = vmatprep.subr.mxu0 0.0
        %809 = vmatpush1.msra.mxu0 0.0
        %810 = vmatprep.subr.mxu0 0.0
        %811 = vmatpush1.msra.mxu0 0.0
        %812 = vmatprep.subr.mxu0 0.0
        %813 = vmatpush1.msra.mxu0 0.0
        %814 = vmatprep.subr.mxu0 0.0
        %815 = vmatpush1.msra.mxu0 0.0
        %816 = vmatprep.subr.mxu0 0.0
        %817 = vmatpush1.msra.mxu0 0.0
        %818 = vmatprep.subr.mxu0 0.0
        %819 = vmatpush1.msra.mxu0 0.0
        %820 = vmatprep.subr.mxu0 0.0
        %821 = vmatpush1.msra.mxu0 0.0
        %822 = vmatprep.subr.mxu0 0.0
        %823 = vmatpush1.msra.mxu0 0.0
        %824 = vmatprep.subr.mxu0 0.0
        %825 = vmatpush1.msra.mxu0 0.0
        %826 = vmatprep.subr.mxu0 0.0
        %827 = vmatpush1.msra.mxu0 0.0
        %828 = vmatprep.subr.mxu0 0.0
        %829 = vmatpush1.msra.mxu0 0.0
        %830 = vmatprep.subr.mxu0 0.0
        %831 = vmatpush1.msra.mxu0 0.0
        %832 = vmatprep.subr.mxu0 0.0
        %833 = vmatpush1.msra.mxu0 0.0
        %834 = vmatprep.subr.mxu0 0.0
        %835 = vmatpush1.msra.mxu0 0.0
        %836 = vmatprep.subr.mxu0 0.0
        %837 = vmatpush1.msra.mxu0 0.0
        %838 = vmatprep.subr.mxu0 0.0
        %839 = vmatpush1.msra.mxu0 0.0
        %840 = vmatprep.subr.mxu0 0.0
        %841 = vmatpush1.msra.mxu0 0.0
        %842 = vmatprep.subr.mxu0 0.0
        %843 = vmatpush1.msra.mxu0 0.0
        %844 = vmatprep.subr.mxu0 0.0
        %845 = vmatpush1.msra.mxu0 0.0
        %846 = vmatprep.subr.mxu0 0.0
        %847 = vmatpush1.msra.mxu0 0.0
        %848 = vmatprep.subr.mxu0 0.0
        %849 = vmatpush1.msra.mxu0 0.0
        %850 = vmatprep.subr.mxu0 0.0
        %851 = vmatpush1.msra.mxu0 0.0
        %852 = vmatprep.mubr.f32.mxu0 0.0
        %853 = vmatmul.mubr.f32.gmra.mrb[0].mxu0 %v786
        %v854 = vpop.f32.mrb[0].mxu0
        %v855 = vadd.f32 0.0, %v854
        %v856 = vpop.f32.mrb[0].mxu0
        %857 = vdwg.mxu0
        %v858 = vsel %vm353, %v352, 0
        %860 = vmatprep.subr.mxu0 0.0
        %861 = vmatpush1.msra.mxu0 %v283
        %862 = vmatprep.subr.mxu0 0.0
        %863 = vmatpush1.msra.mxu0 %v284
        %864 = vmatprep.subr.mxu0 0.0
        %865 = vmatpush1.msra.mxu0 %v285
        %866 = vmatprep.subr.mxu0 0.0
        %867 = vmatpush1.msra.mxu0 %v286
        %868 = vmatprep.subr.mxu0 0.0
        %869 = vmatpush1.msra.mxu0 0.0
        %870 = vmatprep.subr.mxu0 0.0
        %871 = vmatpush1.msra.mxu0 0.0
        %872 = vmatprep.subr.mxu0 0.0
        %873 = vmatpush1.msra.mxu0 0.0
        %874 = vmatprep.subr.mxu0 0.0
        %875 = vmatpush1.msra.mxu0 0.0
        %876 = vmatprep.subr.mxu0 0.0
        %877 = vmatpush1.msra.mxu0 0.0
        %878 = vmatprep.subr.mxu0 0.0
        %879 = vmatpush1.msra.mxu0 0.0
        %880 = vmatprep.subr.mxu0 0.0
        %881 = vmatpush1.msra.mxu0 0.0
        %882 = vmatprep.subr.mxu0 0.0
        %883 = vmatpush1.msra.mxu0 0.0
        %884 = vmatprep.subr.mxu0 0.0
        %885 = vmatpush1.msra.mxu0 0.0
        %886 = vmatprep.subr.mxu0 0.0
        %887 = vmatpush1.msra.mxu0 0.0
        %888 = vmatprep.subr.mxu0 0.0
        %889 = vmatpush1.msra.mxu0 0.0
        %890 = vmatprep.subr.mxu0 0.0
        %891 = vmatpush1.msra.mxu0 0.0
        %892 = vmatprep.subr.mxu0 0.0
        %893 = vmatpush1.msra.mxu0 0.0
        %894 = vmatprep.subr.mxu0 0.0
        %895 = vmatpush1.msra.mxu0 0.0
        %896 = vmatprep.subr.mxu0 0.0
        %897 = vmatpush1.msra.mxu0 0.0
        %898 = vmatprep.subr.mxu0 0.0
        %899 = vmatpush1.msra.mxu0 0.0
        %900 = vmatprep.subr.mxu0 0.0
        %901 = vmatpush1.msra.mxu0 0.0
        %902 = vmatprep.subr.mxu0 0.0
        %903 = vmatpush1.msra.mxu0 0.0
        %904 = vmatprep.subr.mxu0 0.0
        %905 = vmatpush1.msra.mxu0 0.0
        %906 = vmatprep.subr.mxu0 0.0
        %907 = vmatpush1.msra.mxu0 0.0
        %908 = vmatprep.subr.mxu0 0.0
        %909 = vmatpush1.msra.mxu0 0.0
        %910 = vmatprep.subr.mxu0 0.0
        %911 = vmatpush1.msra.mxu0 0.0
        %912 = vmatprep.subr.mxu0 0.0
        %913 = vmatpush1.msra.mxu0 0.0
        %914 = vmatprep.subr.mxu0 0.0
        %915 = vmatpush1.msra.mxu0 0.0
        %916 = vmatprep.subr.mxu0 0.0
        %917 = vmatpush1.msra.mxu0 0.0
        %918 = vmatprep.subr.mxu0 0.0
        %919 = vmatpush1.msra.mxu0 0.0
        %920 = vmatprep.subr.mxu0 0.0
        %921 = vmatpush1.msra.mxu0 0.0
        %922 = vmatprep.subr.mxu0 0.0
        %923 = vmatpush1.msra.mxu0 0.0
        %924 = vmatprep.mubr.f32.mxu0 0.0
        %925 = vmatmul.mubr.f32.gmra.mrb[0].mxu0 %v858
        %v926 = vpop.f32.mrb[0].mxu0
        %v927 = vadd.f32 0.0, %v926
        %v928 = vpop.f32.mrb[0].mxu0
        %929 = vdwg.mxu0
        %v930 = vmul.f32 %v254, %v254
        %v931 = vsel %vm353, %v930, 0.0
        %932 = vadd.xlane.f32.xlu0 %v931
        %v933 = vpop.xlane.xlu0 %932
        %v934 = vrsqrt.pop %v933
        %v935 = vmul.f32 %v933, %v934
        %vm936 = vcmp.eq.f32.partialorder %v933, inf
        %v937 = vsel %vm936, %v933, %v935
        %vm938 = vcmp.eq.f32.partialorder %v933, 0.0
        %v939 = vand.u32 %v933, 2147483648
        %v940 = vsel %vm938, %v939, %v937
        %v941 = vmul.f32 %v255, %v255
        %v942 = vmul.f32 %v256, %v256
        %v943 = vmul.f32 %v257, %v257
        %v944 = vmul.f32 %v258, %v258
        %v945 = vmul.f32 %v259, %v259
        %v946 = vmul.f32 %v260, %v260
        %v947 = vmul.f32 %v261, %v261
        %v948 = vmul.f32 %v262, %v262
        %v949 = vmul.f32 %v263, %v263
        %v950 = vmul.f32 %v264, %v264
        %v951 = vmul.f32 %v265, %v265
        %v952 = vmul.f32 %v266, %v266
        %v953 = vmul.f32 %v267, %v267
        %v954 = vmul.f32 %v268, %v268
        %v955 = vmul.f32 %v269, %v269
        %v956 = vmul.f32 %v270, %v270
        %v957 = vmul.f32 %v271, %v271
        %v958 = vmul.f32 %v272, %v272
        %v959 = vmul.f32 %v273, %v273
        %v960 = vmul.f32 %v274, %v274
        %v961 = vmul.f32 %v275, %v275
        %v962 = vmul.f32 %v276, %v276
        %v963 = vmul.f32 %v277, %v277
        %v964 = vmul.f32 %v278, %v278
        %v965 = vmul.f32 %v279, %v279
        %v966 = vmul.f32 %v280, %v280
        %v967 = vmul.f32 %v281, %v281
        %v968 = vmul.f32 %v282, %v282
        %v969 = vmul.f32 %v283, %v283
        %v970 = vmul.f32 %v284, %v284
        %v971 = vmul.f32 %v285, %v285
        %v972 = vmul.f32 %v286, %v286
        %vm973 = vcmask 130048
        %v974 = vsel %vm973, %v941, 0.0
        %v975 = vsel %vm973, %v942, 0.0
        %v976 = vadd.f32 %v974, %v975
        %v977 = vsel %vm973, %v943, 0.0
        %v978 = vadd.f32 %v976, %v977
        %v979 = vsel %vm973, %v944, 0.0
        %v980 = vadd.f32 %v978, %v979
        %v981 = vrot.slane %v980, 4
        %v982 = vadd.f32 %v980, %v981
        %v983 = vrot.slane %v982, 2
        %v984 = vadd.f32 %v982, %v983
        %v985 = vrot.slane %v984, 1
        %v986 = vadd.f32 %v984, %v985
        %v987 = vsel %vm973, %v945, 0.0
        %v988 = vsel %vm973, %v946, 0.0
        %v989 = vadd.f32 %v987, %v988
        %v990 = vsel %vm973, %v947, 0.0
        %v991 = vadd.f32 %v989, %v990
        %v992 = vsel %vm973, %v948, 0.0
        %v993 = vadd.f32 %v991, %v992
        %v994 = vrot.slane %v993, 4
        %v995 = vadd.f32 %v993, %v994
        %v996 = vrot.slane %v995, 2
        %v997 = vadd.f32 %v995, %v996
        %v998 = vrot.slane %v997, 1
        %v999 = vadd.f32 %v997, %v998
        %v1000 = vsel %vm973, %v949, 0.0
        %v1001 = vsel %vm973, %v950, 0.0
        %v1002 = vadd.f32 %v1000, %v1001
        %v1003 = vsel %vm973, %v951, 0.0
        %v1004 = vadd.f32 %v1002, %v1003
        %v1005 = vsel %vm973, %v952, 0.0
        %v1006 = vadd.f32 %v1004, %v1005
        %v1007 = vrot.slane %v1006, 4
        %v1008 = vadd.f32 %v1006, %v1007
        %v1009 = vrot.slane %v1008, 2
        %v1010 = vadd.f32 %v1008, %v1009
        %v1011 = vrot.slane %v1010, 1
        %v1012 = vadd.f32 %v1010, %v1011
        %v1013 = vsel %vm973, %v953, 0.0
        %v1014 = vsel %vm973, %v954, 0.0
        %v1015 = vadd.f32 %v1013, %v1014
        %v1016 = vsel %vm973, %v955, 0.0
        %v1017 = vadd.f32 %v1015, %v1016
        %v1018 = vsel %vm973, %v956, 0.0
        %v1019 = vadd.f32 %v1017, %v1018
        %v1020 = vrot.slane %v1019, 4
        %v1021 = vadd.f32 %v1019, %v1020
        %v1022 = vrot.slane %v1021, 2
        %v1023 = vadd.f32 %v1021, %v1022
        %v1024 = vrot.slane %v1023, 1
        %v1025 = vadd.f32 %v1023, %v1024
        %v1026 = vsel %vm973, %v957, 0.0
        %v1027 = vsel %vm973, %v958, 0.0
        %v1028 = vadd.f32 %v1026, %v1027
        %v1029 = vsel %vm973, %v959, 0.0
        %v1030 = vadd.f32 %v1028, %v1029
        %v1031 = vsel %vm973, %v960, 0.0
        %v1032 = vadd.f32 %v1030, %v1031
        %v1033 = vrot.slane %v1032, 4
        %v1034 = vadd.f32 %v1032, %v1033
        %v1035 = vrot.slane %v1034, 2
        %v1036 = vadd.f32 %v1034, %v1035
        %v1037 = vrot.slane %v1036, 1
        %v1038 = vadd.f32 %v1036, %v1037
        %v1039 = vsel %vm973, %v961, 0.0
        %v1040 = vsel %vm973, %v962, 0.0
        %v1041 = vadd.f32 %v1039, %v1040
        %v1042 = vsel %vm973, %v963, 0.0
        %v1043 = vadd.f32 %v1041, %v1042
        %v1044 = vsel %vm973, %v964, 0.0
        %v1045 = vadd.f32 %v1043, %v1044
        %v1046 = vrot.slane %v1045, 4
        %v1047 = vadd.f32 %v1045, %v1046
        %v1048 = vrot.slane %v1047, 2
        %v1049 = vadd.f32 %v1047, %v1048
        %v1050 = vrot.slane %v1049, 1
        %v1051 = vadd.f32 %v1049, %v1050
        %v1052 = vsel %vm973, %v965, 0.0
        %v1053 = vsel %vm973, %v966, 0.0
        %v1054 = vadd.f32 %v1052, %v1053
        %v1055 = vsel %vm973, %v967, 0.0
        %v1056 = vadd.f32 %v1054, %v1055
        %v1057 = vsel %vm973, %v968, 0.0
        %v1058 = vadd.f32 %v1056, %v1057
        %v1059 = vrot.slane %v1058, 4
        %v1060 = vadd.f32 %v1058, %v1059
        %v1061 = vrot.slane %v1060, 2
        %v1062 = vadd.f32 %v1060, %v1061
        %v1063 = vrot.slane %v1062, 1
        %v1064 = vadd.f32 %v1062, %v1063
        %v1065 = vsel %vm973, %v969, 0.0
        %v1066 = vsel %vm973, %v970, 0.0
        %v1067 = vadd.f32 %v1065, %v1066
        %v1068 = vsel %vm973, %v971, 0.0
        %v1069 = vadd.f32 %v1067, %v1068
        %v1070 = vsel %vm973, %v972, 0.0
        %v1071 = vadd.f32 %v1069, %v1070
        %v1072 = vrot.slane %v1071, 4
        %v1073 = vadd.f32 %v1071, %v1072
        %v1074 = vrot.slane %v1073, 2
        %v1075 = vadd.f32 %v1073, %v1074
        %v1076 = vrot.slane %v1075, 1
        %v1077 = vadd.f32 %v1075, %v1076
        %v1078 = vrsqrt.pop %v986
        %v1079 = vmul.f32 %v986, %v1078
        %vm1080 = vcmp.eq.f32.partialorder %v986, inf
        %v1081 = vsel %vm1080, %v986, %v1079
        %vm1082 = vcmp.eq.f32.partialorder %v986, 0.0
        %v1083 = vand.u32 %v986, 2147483648
        %v1084 = vsel %vm1082, %v1083, %v1081
        %v1085 = vrsqrt.pop %v999
        %v1086 = vmul.f32 %v999, %v1085
        %vm1087 = vcmp.eq.f32.partialorder %v999, inf
        %v1088 = vsel %vm1087, %v999, %v1086
        %vm1089 = vcmp.eq.f32.partialorder %v999, 0.0
        %v1090 = vand.u32 %v999, 2147483648
        %v1091 = vsel %vm1089, %v1090, %v1088
        %v1092 = vrsqrt.pop %v1012
        %v1093 = vmul.f32 %v1012, %v1092
        %vm1094 = vcmp.eq.f32.partialorder %v1012, inf
        %v1095 = vsel %vm1094, %v1012, %v1093
        %vm1096 = vcmp.eq.f32.partialorder %v1012, 0.0
        %v1097 = vand.u32 %v1012, 2147483648
        %v1098 = vsel %vm1096, %v1097, %v1095
        %v1099 = vrsqrt.pop %v1025
        %v1100 = vmul.f32 %v1025, %v1099
        %vm1101 = vcmp.eq.f32.partialorder %v1025, inf
        %v1102 = vsel %vm1101, %v1025, %v1100
        %vm1103 = vcmp.eq.f32.partialorder %v1025, 0.0
        %v1104 = vand.u32 %v1025, 2147483648
        %v1105 = vsel %vm1103, %v1104, %v1102
        %v1106 = vrsqrt.pop %v1038
        %v1107 = vmul.f32 %v1038, %v1106
        %vm1108 = vcmp.eq.f32.partialorder %v1038, inf
        %v1109 = vsel %vm1108, %v1038, %v1107
        %vm1110 = vcmp.eq.f32.partialorder %v1038, 0.0
        %v1111 = vand.u32 %v1038, 2147483648
        %v1112 = vsel %vm1110, %v1111, %v1109
        %v1113 = vrsqrt.pop %v1051
        %v1114 = vmul.f32 %v1051, %v1113
        %vm1115 = vcmp.eq.f32.partialorder %v1051, inf
        %v1116 = vsel %vm1115, %v1051, %v1114
        %vm1117 = vcmp.eq.f32.partialorder %v1051, 0.0
        %v1118 = vand.u32 %v1051, 2147483648
        %v1119 = vsel %vm1117, %v1118, %v1116
        %v1120 = vrsqrt.pop %v1064
        %v1121 = vmul.f32 %v1064, %v1120
        %vm1122 = vcmp.eq.f32.partialorder %v1064, inf
        %v1123 = vsel %vm1122, %v1064, %v1121
        %vm1124 = vcmp.eq.f32.partialorder %v1064, 0.0
        %v1125 = vand.u32 %v1064, 2147483648
        %v1126 = vsel %vm1124, %v1125, %v1123
        %v1127 = vrsqrt.pop %v1077
        %v1128 = vmul.f32 %v1077, %v1127
        %vm1129 = vcmp.eq.f32.partialorder %v1077, inf
        %v1130 = vsel %vm1129, %v1077, %v1128
        %vm1131 = vcmp.eq.f32.partialorder %v1077, 0.0
        %v1132 = vand.u32 %v1077, 2147483648
        %v1133 = vsel %vm1131, %v1132, %v1130
        %vm1142 = vcmask 1041409
        %v1143 = vsel %vm1142, %v1091, %v1084
        %vm1144 = vcmask 1042434
        %v1145 = vsel %vm1144, %v1098, %v1143
        %vm1146 = vcmask 1043459
        %v1147 = vsel %vm1146, %v1105, %v1145
        %vm1148 = vcmask 1044484
        %v1149 = vsel %vm1148, %v1112, %v1147
        %vm1150 = vcmask 1045509
        %v1151 = vsel %vm1150, %v1119, %v1149
        %vm1152 = vcmask 1046534
        %v1153 = vsel %vm1152, %v1126, %v1151
        %vm1154 = vcmask 1047559
        %v1155 = vsel %vm1154, %v1133, %v1153
        %v1157 = vmul.f32 %v940, %v1155
        %v1158 = vmax.f32 %v1157, 1e-08
        %v1159 = vrcp.pop %v1158
        %v1161 = vrot.slane %v1159, 1
        %v1162 = vrot.slane %v1159, 2
        %v1163 = vrot.slane %v1159, 3
        %v1164 = vrot.slane %v1159, 4
        %v1165 = vrot.slane %v1159, 5
        %v1166 = vrot.slane %v1159, 6
        %v1167 = vrot.slane %v1159, 7
        %v1176 = vmul.f32 %v423, %v1159
        %v1177 = vmul.f32 %v495, %v1161
        %v1178 = vmul.f32 %v567, %v1162
        %v1179 = vmul.f32 %v639, %v1163
        %v1180 = vmul.f32 %v711, %v1164
        %v1181 = vmul.f32 %v783, %v1165
        %v1182 = vmul.f32 %v855, %v1166
        %v1183 = vmul.f32 %v927, %v1167
        %v1192 = vrot.slane %v1177, 7
        %v1193 = vsel %vm1142, %v1192, %v1176
        %v1194 = vrot.slane %v1178, 6
        %v1195 = vsel %vm1144, %v1194, %v1193
        %v1196 = vrot.slane %v1179, 5
        %v1197 = vsel %vm1146, %v1196, %v1195
        %v1198 = vrot.slane %v1180, 4
        %v1199 = vsel %vm1148, %v1198, %v1197
        %v1200 = vrot.slane %v1181, 3
        %v1201 = vsel %vm1150, %v1200, %v1199
        %v1202 = vrot.slane %v1182, 2
        %v1203 = vsel %vm1152, %v1202, %v1201
        %v1204 = vrot.slane %v1183, 1
        %v1205 = vsel %vm1154, %v1204, %v1203
        %v1207 = vsel %vm973, %v1205, -inf
        %1208 = vmax.xlane.f32.xlu0 %v1207
        %v1209 = vpop.xlane.xlu0 %1208
        %v1211 = vrot.slane %v1209, 1
        %v1212 = vrot.slane %v1209, 2
        %v1213 = vrot.slane %v1209, 3
        %v1214 = vrot.slane %v1209, 4
        %v1215 = vrot.slane %v1209, 5
        %v1216 = vrot.slane %v1209, 6
        %v1217 = vrot.slane %v1209, 7
        %v1226 = vsub.f32 %v1176, %v1209
        %v1227 = vsub.f32 %v1177, %v1211
        %v1228 = vsub.f32 %v1178, %v1212
        %v1229 = vsub.f32 %v1179, %v1213
        %v1230 = vsub.f32 %v1180, %v1214
        %v1231 = vsub.f32 %v1181, %v1215
        %v1232 = vsub.f32 %v1182, %v1216
        %v1233 = vsub.f32 %v1183, %v1217
        %v1234 = vmul.f32 %v1226, 1.442695
        %v1235 = vpow.pop %v1234
        %v1236 = vmul.f32 %v1227, 1.442695
        %v1237 = vpow.pop %v1236
        %v1238 = vmul.f32 %v1228, 1.442695
        %v1239 = vpow.pop %v1238
        %v1240 = vmul.f32 %v1229, 1.442695
        %v1241 = vpow.pop %v1240
        %v1242 = vmul.f32 %v1230, 1.442695
        %v1243 = vpow.pop %v1242
        %v1244 = vmul.f32 %v1231, 1.442695
        %v1245 = vpow.pop %v1244
        %v1246 = vmul.f32 %v1232, 1.442695
        %v1247 = vpow.pop %v1246
        %v1248 = vmul.f32 %v1233, 1.442695
        %v1249 = vpow.pop %v1248
        %v1258 = vrot.slane %v1237, 7
        %v1259 = vsel %vm1142, %v1258, %v1235
        %v1260 = vrot.slane %v1239, 6
        %v1261 = vsel %vm1144, %v1260, %v1259
        %v1262 = vrot.slane %v1241, 5
        %v1263 = vsel %vm1146, %v1262, %v1261
        %v1264 = vrot.slane %v1243, 4
        %v1265 = vsel %vm1148, %v1264, %v1263
        %v1266 = vrot.slane %v1245, 3
        %v1267 = vsel %vm1150, %v1266, %v1265
        %v1268 = vrot.slane %v1247, 2
        %v1269 = vsel %vm1152, %v1268, %v1267
        %v1270 = vrot.slane %v1249, 1
        %v1271 = vsel %vm1154, %v1270, %v1269
        %v1273 = vsel %vm973, %v1271, 0.0
        %1274 = vadd.xlane.f32.xlu0 %v1273
        %v1275 = vpop.xlane.xlu0 %1274
        %v1276 = vrcp.pop %v1275
        %v1278 = vrot.slane %v1276, 1
        %v1279 = vrot.slane %v1276, 2
        %v1280 = vrot.slane %v1276, 3
        %v1281 = vrot.slane %v1276, 4
        %v1282 = vrot.slane %v1276, 5
        %v1283 = vrot.slane %v1276, 6
        %v1284 = vrot.slane %v1276, 7
        %v1293 = vmul.f32 %v1235, %v1276
        %v1294 = vmul.f32 %v1237, %v1278
        %v1295 = vmul.f32 %v1239, %v1279
        %v1296 = vmul.f32 %v1241, %v1280
        %v1297 = vmul.f32 %v1243, %v1281
        %v1298 = vmul.f32 %v1245, %v1282
        %v1299 = vmul.f32 %v1247, %v1283
        %v1300 = vmul.f32 %v1249, %v1284
        %v1302 = vsel %vm973, %v1293, 0
        %v1305 = vsel %vm973, %v287, 0
        %v1308 = vsel %vm973, %v288, 0
        %1310 = vmatprep.subr.mxu0 0.0
        %1311 = vmatpush1.xpose.msra.mxu0 %v1305
        %1312 = vmatprep.subr.mxu0 0.0
        %1313 = vmatpush1.xpose.msra.mxu0 %v1308
        %1314 = vmatprep.subr.mxu0 0.0
        %1315 = vmatpush1.xpose.msra.mxu0 0.0
        %1316 = vmatprep.subr.mxu0 0.0
        %1317 = vmatpush1.xpose.msra.mxu0 0.0
        %1318 = vmatprep.subr.mxu0 0.0
        %1319 = vmatpush1.xpose.msra.mxu0 0.0
        %1320 = vmatprep.subr.mxu0 0.0
        %1321 = vmatpush1.xpose.msra.mxu0 0.0
        %1322 = vmatprep.subr.mxu0 0.0
        %1323 = vmatpush1.xpose.msra.mxu0 0.0
        %1324 = vmatprep.subr.mxu0 0.0
        %1325 = vmatpush1.xpose.msra.mxu0 0.0
        %1326 = vmatprep.subr.mxu0 0.0
        %1327 = vmatpush1.xpose.msra.mxu0 0.0
        %1328 = vmatprep.subr.mxu0 0.0
        %1329 = vmatpush1.xpose.msra.mxu0 0.0
        %1330 = vmatprep.subr.mxu0 0.0
        %1331 = vmatpush1.xpose.msra.mxu0 0.0
        %1332 = vmatprep.subr.mxu0 0.0
        %1333 = vmatpush1.xpose.msra.mxu0 0.0
        %1334 = vmatprep.subr.mxu0 0.0
        %1335 = vmatpush1.xpose.msra.mxu0 0.0
        %1336 = vmatprep.subr.mxu0 0.0
        %1337 = vmatpush1.xpose.msra.mxu0 0.0
        %1338 = vmatprep.subr.mxu0 0.0
        %1339 = vmatpush1.xpose.msra.mxu0 0.0
        %1340 = vmatprep.subr.mxu0 0.0
        %1341 = vmatpush1.xpose.msra.mxu0 0.0
        %1342 = vmatprep.subr.mxu0 0.0
        %1343 = vmatpush1.xpose.msra.mxu0 0.0
        %1344 = vmatprep.subr.mxu0 0.0
        %1345 = vmatpush1.xpose.msra.mxu0 0.0
        %1346 = vmatprep.subr.mxu0 0.0
        %1347 = vmatpush1.xpose.msra.mxu0 0.0
        %1348 = vmatprep.subr.mxu0 0.0
        %1349 = vmatpush1.xpose.msra.mxu0 0.0
        %1350 = vmatprep.subr.mxu0 0.0
        %1351 = vmatpush1.xpose.msra.mxu0 0.0
        %1352 = vmatprep.subr.mxu0 0.0
        %1353 = vmatpush1.xpose.msra.mxu0 0.0
        %1354 = vmatprep.subr.mxu0 0.0
        %1355 = vmatpush1.xpose.msra.mxu0 0.0
        %1356 = vmatprep.subr.mxu0 0.0
        %1357 = vmatpush1.xpose.msra.mxu0 0.0
        %1358 = vmatprep.subr.mxu0 0.0
        %1359 = vmatpush1.xpose.msra.mxu0 0.0
        %1360 = vmatprep.subr.mxu0 0.0
        %1361 = vmatpush1.xpose.msra.mxu0 0.0
        %1362 = vmatprep.subr.mxu0 0.0
        %1363 = vmatpush1.xpose.msra.mxu0 0.0
        %1364 = vmatprep.subr.mxu0 0.0
        %1365 = vmatpush1.xpose.msra.mxu0 0.0
        %1366 = vmatprep.subr.mxu0 0.0
        %1367 = vmatpush1.xpose.msra.mxu0 0.0
        %1368 = vmatprep.subr.mxu0 0.0
        %1369 = vmatpush1.xpose.msra.mxu0 0.0
        %1370 = vmatprep.subr.mxu0 0.0
        %1371 = vmatpush1.xpose.msra.mxu0 0.0
        %1372 = vmatprep.subr.mxu0 0.0
        %1373 = vmatpush1.xpose.msra.mxu0 0.0
        %1374 = vmatprep.mubr.f32.mxu0 0.0
        %1375 = vmatmul.mubr.f32.gmra.mrb[0].mxu0 %v1302
        %v1376 = vpop.f32.mrb[0].mxu0
        %v1377 = vadd.f32 0.0, %v1376
        %v1378 = vpop.f32.mrb[0].mxu0
        %1379 = vdwg.mxu0
        %v1381 = vsel %vm973, %v1294, 0
        %v1384 = vsel %vm973, %v289, 0
        %v1387 = vsel %vm973, %v290, 0
        %1389 = vmatprep.subr.mxu0 0.0
        %1390 = vmatpush1.xpose.msra.mxu0 %v1384
        %1391 = vmatprep.subr.mxu0 0.0
        %1392 = vmatpush1.xpose.msra.mxu0 %v1387
        %1393 = vmatprep.subr.mxu0 0.0
        %1394 = vmatpush1.xpose.msra.mxu0 0.0
        %1395 = vmatprep.subr.mxu0 0.0
        %1396 = vmatpush1.xpose.msra.mxu0 0.0
        %1397 = vmatprep.subr.mxu0 0.0
        %1398 = vmatpush1.xpose.msra.mxu0 0.0
        %1399 = vmatprep.subr.mxu0 0.0
        %1400 = vmatpush1.xpose.msra.mxu0 0.0
        %1401 = vmatprep.subr.mxu0 0.0
        %1402 = vmatpush1.xpose.msra.mxu0 0.0
        %1403 = vmatprep.subr.mxu0 0.0
        %1404 = vmatpush1.xpose.msra.mxu0 0.0
        %1405 = vmatprep.subr.mxu0 0.0
        %1406 = vmatpush1.xpose.msra.mxu0 0.0
        %1407 = vmatprep.subr.mxu0 0.0
        %1408 = vmatpush1.xpose.msra.mxu0 0.0
        %1409 = vmatprep.subr.mxu0 0.0
        %1410 = vmatpush1.xpose.msra.mxu0 0.0
        %1411 = vmatprep.subr.mxu0 0.0
        %1412 = vmatpush1.xpose.msra.mxu0 0.0
        %1413 = vmatprep.subr.mxu0 0.0
        %1414 = vmatpush1.xpose.msra.mxu0 0.0
        %1415 = vmatprep.subr.mxu0 0.0
        %1416 = vmatpush1.xpose.msra.mxu0 0.0
        %1417 = vmatprep.subr.mxu0 0.0
        %1418 = vmatpush1.xpose.msra.mxu0 0.0
        %1419 = vmatprep.subr.mxu0 0.0
        %1420 = vmatpush1.xpose.msra.mxu0 0.0
        %1421 = vmatprep.subr.mxu0 0.0
        %1422 = vmatpush1.xpose.msra.mxu0 0.0
        %1423 = vmatprep.subr.mxu0 0.0
        %1424 = vmatpush1.xpose.msra.mxu0 0.0
        %1425 = vmatprep.subr.mxu0 0.0
        %1426 = vmatpush1.xpose.msra.mxu0 0.0
        %1427 = vmatprep.subr.mxu0 0.0
        %1428 = vmatpush1.xpose.msra.mxu0 0.0
        %1429 = vmatprep.subr.mxu0 0.0
        %1430 = vmatpush1.xpose.msra.mxu0 0.0
        %1431 = vmatprep.subr.mxu0 0.0
        %1432 = vmatpush1.xpose.msra.mxu0 0.0
        %1433 = vmatprep.subr.mxu0 0.0
        %1434 = vmatpush1.xpose.msra.mxu0 0.0
        %1435 = vmatprep.subr.mxu0 0.0
        %1436 = vmatpush1.xpose.msra.mxu0 0.0
        %1437 = vmatprep.subr.mxu0 0.0
        %1438 = vmatpush1.xpose.msra.mxu0 0.0
        %1439 = vmatprep.subr.mxu0 0.0
        %1440 = vmatpush1.xpose.msra.mxu0 0.0
        %1441 = vmatprep.subr.mxu0 0.0
        %1442 = vmatpush1.xpose.msra.mxu0 0.0
        %1443 = vmatprep.subr.mxu0 0.0
        %1444 = vmatpush1.xpose.msra.mxu0 0.0
        %1445 = vmatprep.subr.mxu0 0.0
        %1446 = vmatpush1.xpose.msra.mxu0 0.0
        %1447 = vmatprep.subr.mxu0 0.0
        %1448 = vmatpush1.xpose.msra.mxu0 0.0
        %1449 = vmatprep.subr.mxu0 0.0
        %1450 = vmatpush1.xpose.msra.mxu0 0.0
        %1451 = vmatprep.subr.mxu0 0.0
        %1452 = vmatpush1.xpose.msra.mxu0 0.0
        %1453 = vmatprep.mubr.f32.mxu0 0.0
        %1454 = vmatmul.mubr.f32.gmra.mrb[0].mxu0 %v1381
        %v1455 = vpop.f32.mrb[0].mxu0
        %v1456 = vadd.f32 0.0, %v1455
        %v1457 = vpop.f32.mrb[0].mxu0
        %1458 = vdwg.mxu0
        %v1460 = vsel %vm973, %v1295, 0
        %v1463 = vsel %vm973, %v291, 0
        %v1466 = vsel %vm973, %v292, 0
        %1468 = vmatprep.subr.mxu0 0.0
        %1469 = vmatpush1.xpose.msra.mxu0 %v1463
        %1470 = vmatprep.subr.mxu0 0.0
        %1471 = vmatpush1.xpose.msra.mxu0 %v1466
        %1472 = vmatprep.subr.mxu0 0.0
        %1473 = vmatpush1.xpose.msra.mxu0 0.0
        %1474 = vmatprep.subr.mxu0 0.0
        %1475 = vmatpush1.xpose.msra.mxu0 0.0
        %1476 = vmatprep.subr.mxu0 0.0
        %1477 = vmatpush1.xpose.msra.mxu0 0.0
        %1478 = vmatprep.subr.mxu0 0.0
        %1479 = vmatpush1.xpose.msra.mxu0 0.0
        %1480 = vmatprep.subr.mxu0 0.0
        %1481 = vmatpush1.xpose.msra.mxu0 0.0
        %1482 = vmatprep.subr.mxu0 0.0
        %1483 = vmatpush1.xpose.msra.mxu0 0.0
        %1484 = vmatprep.subr.mxu0 0.0
        %1485 = vmatpush1.xpose.msra.mxu0 0.0
        %1486 = vmatprep.subr.mxu0 0.0
        %1487 = vmatpush1.xpose.msra.mxu0 0.0
        %1488 = vmatprep.subr.mxu0 0.0
        %1489 = vmatpush1.xpose.msra.mxu0 0.0
        %1490 = vmatprep.subr.mxu0 0.0
        %1491 = vmatpush1.xpose.msra.mxu0 0.0
        %1492 = vmatprep.subr.mxu0 0.0
        %1493 = vmatpush1.xpose.msra.mxu0 0.0
        %1494 = vmatprep.subr.mxu0 0.0
        %1495 = vmatpush1.xpose.msra.mxu0 0.0
        %1496 = vmatprep.subr.mxu0 0.0
        %1497 = vmatpush1.xpose.msra.mxu0 0.0
        %1498 = vmatprep.subr.mxu0 0.0
        %1499 = vmatpush1.xpose.msra.mxu0 0.0
        %1500 = vmatprep.subr.mxu0 0.0
        %1501 = vmatpush1.xpose.msra.mxu0 0.0
        %1502 = vmatprep.subr.mxu0 0.0
        %1503 = vmatpush1.xpose.msra.mxu0 0.0
        %1504 = vmatprep.subr.mxu0 0.0
        %1505 = vmatpush1.xpose.msra.mxu0 0.0
        %1506 = vmatprep.subr.mxu0 0.0
        %1507 = vmatpush1.xpose.msra.mxu0 0.0
        %1508 = vmatprep.subr.mxu0 0.0
        %1509 = vmatpush1.xpose.msra.mxu0 0.0
        %1510 = vmatprep.subr.mxu0 0.0
        %1511 = vmatpush1.xpose.msra.mxu0 0.0
        %1512 = vmatprep.subr.mxu0 0.0
        %1513 = vmatpush1.xpose.msra.mxu0 0.0
        %1514 = vmatprep.subr.mxu0 0.0
        %1515 = vmatpush1.xpose.msra.mxu0 0.0
        %1516 = vmatprep.subr.mxu0 0.0
        %1517 = vmatpush1.xpose.msra.mxu0 0.0
        %1518 = vmatprep.subr.mxu0 0.0
        %1519 = vmatpush1.xpose.msra.mxu0 0.0
        %1520 = vmatprep.subr.mxu0 0.0
        %1521 = vmatpush1.xpose.msra.mxu0 0.0
        %1522 = vmatprep.subr.mxu0 0.0
        %1523 = vmatpush1.xpose.msra.mxu0 0.0
        %1524 = vmatprep.subr.mxu0 0.0
        %1525 = vmatpush1.xpose.msra.mxu0 0.0
        %1526 = vmatprep.subr.mxu0 0.0
        %1527 = vmatpush1.xpose.msra.mxu0 0.0
        %1528 = vmatprep.subr.mxu0 0.0
        %1529 = vmatpush1.xpose.msra.mxu0 0.0
        %1530 = vmatprep.subr.mxu0 0.0
        %1531 = vmatpush1.xpose.msra.mxu0 0.0
        %1532 = vmatprep.mubr.f32.mxu0 0.0
        %1533 = vmatmul.mubr.f32.gmra.mrb[0].mxu0 %v1460
        %v1534 = vpop.f32.mrb[0].mxu0
        %v1535 = vadd.f32 0.0, %v1534
        %v1536 = vpop.f32.mrb[0].mxu0
        %1537 = vdwg.mxu0
        %v1539 = vsel %vm973, %v1296, 0
        %v1542 = vsel %vm973, %v293, 0
        %v1545 = vsel %vm973, %v294, 0
        %1547 = vmatprep.subr.mxu0 0.0
        %1548 = vmatpush1.xpose.msra.mxu0 %v1542
        %1549 = vmatprep.subr.mxu0 0.0
        %1550 = vmatpush1.xpose.msra.mxu0 %v1545
        %1551 = vmatprep.subr.mxu0 0.0
        %1552 = vmatpush1.xpose.msra.mxu0 0.0
        %1553 = vmatprep.subr.mxu0 0.0
        %1554 = vmatpush1.xpose.msra.mxu0 0.0
        %1555 = vmatprep.subr.mxu0 0.0
        %1556 = vmatpush1.xpose.msra.mxu0 0.0
        %1557 = vmatprep.subr.mxu0 0.0
        %1558 = vmatpush1.xpose.msra.mxu0 0.0
        %1559 = vmatprep.subr.mxu0 0.0
        %1560 = vmatpush1.xpose.msra.mxu0 0.0
        %1561 = vmatprep.subr.mxu0 0.0
        %1562 = vmatpush1.xpose.msra.mxu0 0.0
        %1563 = vmatprep.subr.mxu0 0.0
        %1564 = vmatpush1.xpose.msra.mxu0 0.0
        %1565 = vmatprep.subr.mxu0 0.0
        %1566 = vmatpush1.xpose.msra.mxu0 0.0
        %1567 = vmatprep.subr.mxu0 0.0
        %1568 = vmatpush1.xpose.msra.mxu0 0.0
        %1569 = vmatprep.subr.mxu0 0.0
        %1570 = vmatpush1.xpose.msra.mxu0 0.0
        %1571 = vmatprep.subr.mxu0 0.0
        %1572 = vmatpush1.xpose.msra.mxu0 0.0
        %1573 = vmatprep.subr.mxu0 0.0
        %1574 = vmatpush1.xpose.msra.mxu0 0.0
        %1575 = vmatprep.subr.mxu0 0.0
        %1576 = vmatpush1.xpose.msra.mxu0 0.0
        %1577 = vmatprep.subr.mxu0 0.0
        %1578 = vmatpush1.xpose.msra.mxu0 0.0
        %1579 = vmatprep.subr.mxu0 0.0
        %1580 = vmatpush1.xpose.msra.mxu0 0.0
        %1581 = vmatprep.subr.mxu0 0.0
        %1582 = vmatpush1.xpose.msra.mxu0 0.0
        %1583 = vmatprep.subr.mxu0 0.0
        %1584 = vmatpush1.xpose.msra.mxu0 0.0
        %1585 = vmatprep.subr.mxu0 0.0
        %1586 = vmatpush1.xpose.msra.mxu0 0.0
        %1587 = vmatprep.subr.mxu0 0.0
        %1588 = vmatpush1.xpose.msra.mxu0 0.0
        %1589 = vmatprep.subr.mxu0 0.0
        %1590 = vmatpush1.xpose.msra.mxu0 0.0
        %1591 = vmatprep.subr.mxu0 0.0
        %1592 = vmatpush1.xpose.msra.mxu0 0.0
        %1593 = vmatprep.subr.mxu0 0.0
        %1594 = vmatpush1.xpose.msra.mxu0 0.0
        %1595 = vmatprep.subr.mxu0 0.0
        %1596 = vmatpush1.xpose.msra.mxu0 0.0
        %1597 = vmatprep.subr.mxu0 0.0
        %1598 = vmatpush1.xpose.msra.mxu0 0.0
        %1599 = vmatprep.subr.mxu0 0.0
        %1600 = vmatpush1.xpose.msra.mxu0 0.0
        %1601 = vmatprep.subr.mxu0 0.0
        %1602 = vmatpush1.xpose.msra.mxu0 0.0
        %1603 = vmatprep.subr.mxu0 0.0
        %1604 = vmatpush1.xpose.msra.mxu0 0.0
        %1605 = vmatprep.subr.mxu0 0.0
        %1606 = vmatpush1.xpose.msra.mxu0 0.0
        %1607 = vmatprep.subr.mxu0 0.0
        %1608 = vmatpush1.xpose.msra.mxu0 0.0
        %1609 = vmatprep.subr.mxu0 0.0
        %1610 = vmatpush1.xpose.msra.mxu0 0.0
        %1611 = vmatprep.mubr.f32.mxu0 0.0
        %1612 = vmatmul.mubr.f32.gmra.mrb[0].mxu0 %v1539
        %v1613 = vpop.f32.mrb[0].mxu0
        %v1614 = vadd.f32 0.0, %v1613
        %v1615 = vpop.f32.mrb[0].mxu0
        %1616 = vdwg.mxu0
        %v1618 = vsel %vm973, %v1297, 0
        %v1621 = vsel %vm973, %v295, 0
        %v1624 = vsel %vm973, %v296, 0
        %1626 = vmatprep.subr.mxu0 0.0
        %1627 = vmatpush1.xpose.msra.mxu0 %v1621
        %1628 = vmatprep.subr.mxu0 0.0
        %1629 = vmatpush1.xpose.msra.mxu0 %v1624
        %1630 = vmatprep.subr.mxu0 0.0
        %1631 = vmatpush1.xpose.msra.mxu0 0.0
        %1632 = vmatprep.subr.mxu0 0.0
        %1633 = vmatpush1.xpose.msra.mxu0 0.0
        %1634 = vmatprep.subr.mxu0 0.0
        %1635 = vmatpush1.xpose.msra.mxu0 0.0
        %1636 = vmatprep.subr.mxu0 0.0
        %1637 = vmatpush1.xpose.msra.mxu0 0.0
        %1638 = vmatprep.subr.mxu0 0.0
        %1639 = vmatpush1.xpose.msra.mxu0 0.0
        %1640 = vmatprep.subr.mxu0 0.0
        %1641 = vmatpush1.xpose.msra.mxu0 0.0
        %1642 = vmatprep.subr.mxu0 0.0
        %1643 = vmatpush1.xpose.msra.mxu0 0.0
        %1644 = vmatprep.subr.mxu0 0.0
        %1645 = vmatpush1.xpose.msra.mxu0 0.0
        %1646 = vmatprep.subr.mxu0 0.0
        %1647 = vmatpush1.xpose.msra.mxu0 0.0
        %1648 = vmatprep.subr.mxu0 0.0
        %1649 = vmatpush1.xpose.msra.mxu0 0.0
        %1650 = vmatprep.subr.mxu0 0.0
        %1651 = vmatpush1.xpose.msra.mxu0 0.0
        %1652 = vmatprep.subr.mxu0 0.0
        %1653 = vmatpush1.xpose.msra.mxu0 0.0
        %1654 = vmatprep.subr.mxu0 0.0
        %1655 = vmatpush1.xpose.msra.mxu0 0.0
        %1656 = vmatprep.subr.mxu0 0.0
        %1657 = vmatpush1.xpose.msra.mxu0 0.0
        %1658 = vmatprep.subr.mxu0 0.0
        %1659 = vmatpush1.xpose.msra.mxu0 0.0
        %1660 = vmatprep.subr.mxu0 0.0
        %1661 = vmatpush1.xpose.msra.mxu0 0.0
        %1662 = vmatprep.subr.mxu0 0.0
        %1663 = vmatpush1.xpose.msra.mxu0 0.0
        %1664 = vmatprep.subr.mxu0 0.0
        %1665 = vmatpush1.xpose.msra.mxu0 0.0
        %1666 = vmatprep.subr.mxu0 0.0
        %1667 = vmatpush1.xpose.msra.mxu0 0.0
        %1668 = vmatprep.subr.mxu0 0.0
        %1669 = vmatpush1.xpose.msra.mxu0 0.0
        %1670 = vmatprep.subr.mxu0 0.0
        %1671 = vmatpush1.xpose.msra.mxu0 0.0
        %1672 = vmatprep.subr.mxu0 0.0
        %1673 = vmatpush1.xpose.msra.mxu0 0.0
        %1674 = vmatprep.subr.mxu0 0.0
        %1675 = vmatpush1.xpose.msra.mxu0 0.0
        %1676 = vmatprep.subr.mxu0 0.0
        %1677 = vmatpush1.xpose.msra.mxu0 0.0
        %1678 = vmatprep.subr.mxu0 0.0
        %1679 = vmatpush1.xpose.msra.mxu0 0.0
        %1680 = vmatprep.subr.mxu0 0.0
        %1681 = vmatpush1.xpose.msra.mxu0 0.0
        %1682 = vmatprep.subr.mxu0 0.0
        %1683 = vmatpush1.xpose.msra.mxu0 0.0
        %1684 = vmatprep.subr.mxu0 0.0
        %1685 = vmatpush1.xpose.msra.mxu0 0.0
        %1686 = vmatprep.subr.mxu0 0.0
        %1687 = vmatpush1.xpose.msra.mxu0 0.0
        %1688 = vmatprep.subr.mxu0 0.0
        %1689 = vmatpush1.xpose.msra.mxu0 0.0
        %1690 = vmatprep.mubr.f32.mxu0 0.0
        %1691 = vmatmul.mubr.f32.gmra.mrb[0].mxu0 %v1618
        %v1692 = vpop.f32.mrb[0].mxu0
        %v1693 = vadd.f32 0.0, %v1692
        %v1694 = vpop.f32.mrb[0].mxu0
        %1695 = vdwg.mxu0
        %v1697 = vsel %vm973, %v1298, 0
        %v1700 = vsel %vm973, %v297, 0
        %v1703 = vsel %vm973, %v298, 0
        %1705 = vmatprep.subr.mxu0 0.0
        %1706 = vmatpush1.xpose.msra.mxu0 %v1700
        %1707 = vmatprep.subr.mxu0 0.0
        %1708 = vmatpush1.xpose.msra.mxu0 %v1703
        %1709 = vmatprep.subr.mxu0 0.0
        %1710 = vmatpush1.xpose.msra.mxu0 0.0
        %1711 = vmatprep.subr.mxu0 0.0
        %1712 = vmatpush1.xpose.msra.mxu0 0.0
        %1713 = vmatprep.subr.mxu0 0.0
        %1714 = vmatpush1.xpose.msra.mxu0 0.0
        %1715 = vmatprep.subr.mxu0 0.0
        %1716 = vmatpush1.xpose.msra.mxu0 0.0
        %1717 = vmatprep.subr.mxu0 0.0
        %1718 = vmatpush1.xpose.msra.mxu0 0.0
        %1719 = vmatprep.subr.mxu0 0.0
        %1720 = vmatpush1.xpose.msra.mxu0 0.0
        %1721 = vmatprep.subr.mxu0 0.0
        %1722 = vmatpush1.xpose.msra.mxu0 0.0
        %1723 = vmatprep.subr.mxu0 0.0
        %1724 = vmatpush1.xpose.msra.mxu0 0.0
        %1725 = vmatprep.subr.mxu0 0.0
        %1726 = vmatpush1.xpose.msra.mxu0 0.0
        %1727 = vmatprep.subr.mxu0 0.0
        %1728 = vmatpush1.xpose.msra.mxu0 0.0
        %1729 = vmatprep.subr.mxu0 0.0
        %1730 = vmatpush1.xpose.msra.mxu0 0.0
        %1731 = vmatprep.subr.mxu0 0.0
        %1732 = vmatpush1.xpose.msra.mxu0 0.0
        %1733 = vmatprep.subr.mxu0 0.0
        %1734 = vmatpush1.xpose.msra.mxu0 0.0
        %1735 = vmatprep.subr.mxu0 0.0
        %1736 = vmatpush1.xpose.msra.mxu0 0.0
        %1737 = vmatprep.subr.mxu0 0.0
        %1738 = vmatpush1.xpose.msra.mxu0 0.0
        %1739 = vmatprep.subr.mxu0 0.0
        %1740 = vmatpush1.xpose.msra.mxu0 0.0
        %1741 = vmatprep.subr.mxu0 0.0
        %1742 = vmatpush1.xpose.msra.mxu0 0.0
        %1743 = vmatprep.subr.mxu0 0.0
        %1744 = vmatpush1.xpose.msra.mxu0 0.0
        %1745 = vmatprep.subr.mxu0 0.0
        %1746 = vmatpush1.xpose.msra.mxu0 0.0
        %1747 = vmatprep.subr.mxu0 0.0
        %1748 = vmatpush1.xpose.msra.mxu0 0.0
        %1749 = vmatprep.subr.mxu0 0.0
        %1750 = vmatpush1.xpose.msra.mxu0 0.0
        %1751 = vmatprep.subr.mxu0 0.0
        %1752 = vmatpush1.xpose.msra.mxu0 0.0
        %1753 = vmatprep.subr.mxu0 0.0
        %1754 = vmatpush1.xpose.msra.mxu0 0.0
        %1755 = vmatprep.subr.mxu0 0.0
        %1756 = vmatpush1.xpose.msra.mxu0 0.0
        %1757 = vmatprep.subr.mxu0 0.0
        %1758 = vmatpush1.xpose.msra.mxu0 0.0
        %1759 = vmatprep.subr.mxu0 0.0
        %1760 = vmatpush1.xpose.msra.mxu0 0.0
        %1761 = vmatprep.subr.mxu0 0.0
        %1762 = vmatpush1.xpose.msra.mxu0 0.0
        %1763 = vmatprep.subr.mxu0 0.0
        %1764 = vmatpush1.xpose.msra.mxu0 0.0
        %1765 = vmatprep.subr.mxu0 0.0
        %1766 = vmatpush1.xpose.msra.mxu0 0.0
        %1767 = vmatprep.subr.mxu0 0.0
        %1768 = vmatpush1.xpose.msra.mxu0 0.0
        %1769 = vmatprep.mubr.f32.mxu0 0.0
        %1770 = vmatmul.mubr.f32.gmra.mrb[0].mxu0 %v1697
        %v1771 = vpop.f32.mrb[0].mxu0
        %v1772 = vadd.f32 0.0, %v1771
        %v1773 = vpop.f32.mrb[0].mxu0
        %1774 = vdwg.mxu0
        %v1776 = vsel %vm973, %v1299, 0
        %v1779 = vsel %vm973, %v299, 0
        %v1782 = vsel %vm973, %v300, 0
        %1784 = vmatprep.subr.mxu0 0.0
        %1785 = vmatpush1.xpose.msra.mxu0 %v1779
        %1786 = vmatprep.subr.mxu0 0.0
        %1787 = vmatpush1.xpose.msra.mxu0 %v1782
        %1788 = vmatprep.subr.mxu0 0.0
        %1789 = vmatpush1.xpose.msra.mxu0 0.0
        %1790 = vmatprep.subr.mxu0 0.0
        %1791 = vmatpush1.xpose.msra.mxu0 0.0
        %1792 = vmatprep.subr.mxu0 0.0
        %1793 = vmatpush1.xpose.msra.mxu0 0.0
        %1794 = vmatprep.subr.mxu0 0.0
        %1795 = vmatpush1.xpose.msra.mxu0 0.0
        %1796 = vmatprep.subr.mxu0 0.0
        %1797 = vmatpush1.xpose.msra.mxu0 0.0
        %1798 = vmatprep.subr.mxu0 0.0
        %1799 = vmatpush1.xpose.msra.mxu0 0.0
        %1800 = vmatprep.subr.mxu0 0.0
        %1801 = vmatpush1.xpose.msra.mxu0 0.0
        %1802 = vmatprep.subr.mxu0 0.0
        %1803 = vmatpush1.xpose.msra.mxu0 0.0
        %1804 = vmatprep.subr.mxu0 0.0
        %1805 = vmatpush1.xpose.msra.mxu0 0.0
        %1806 = vmatprep.subr.mxu0 0.0
        %1807 = vmatpush1.xpose.msra.mxu0 0.0
        %1808 = vmatprep.subr.mxu0 0.0
        %1809 = vmatpush1.xpose.msra.mxu0 0.0
        %1810 = vmatprep.subr.mxu0 0.0
        %1811 = vmatpush1.xpose.msra.mxu0 0.0
        %1812 = vmatprep.subr.mxu0 0.0
        %1813 = vmatpush1.xpose.msra.mxu0 0.0
        %1814 = vmatprep.subr.mxu0 0.0
        %1815 = vmatpush1.xpose.msra.mxu0 0.0
        %1816 = vmatprep.subr.mxu0 0.0
        %1817 = vmatpush1.xpose.msra.mxu0 0.0
        %1818 = vmatprep.subr.mxu0 0.0
        %1819 = vmatpush1.xpose.msra.mxu0 0.0
        %1820 = vmatprep.subr.mxu0 0.0
        %1821 = vmatpush1.xpose.msra.mxu0 0.0
        %1822 = vmatprep.subr.mxu0 0.0
        %1823 = vmatpush1.xpose.msra.mxu0 0.0
        %1824 = vmatprep.subr.mxu0 0.0
        %1825 = vmatpush1.xpose.msra.mxu0 0.0
        %1826 = vmatprep.subr.mxu0 0.0
        %1827 = vmatpush1.xpose.msra.mxu0 0.0
        %1828 = vmatprep.subr.mxu0 0.0
        %1829 = vmatpush1.xpose.msra.mxu0 0.0
        %1830 = vmatprep.subr.mxu0 0.0
        %1831 = vmatpush1.xpose.msra.mxu0 0.0
        %1832 = vmatprep.subr.mxu0 0.0
        %1833 = vmatpush1.xpose.msra.mxu0 0.0
        %1834 = vmatprep.subr.mxu0 0.0
        %1835 = vmatpush1.xpose.msra.mxu0 0.0
        %1836 = vmatprep.subr.mxu0 0.0
        %1837 = vmatpush1.xpose.msra.mxu0 0.0
        %1838 = vmatprep.subr.mxu0 0.0
        %1839 = vmatpush1.xpose.msra.mxu0 0.0
        %1840 = vmatprep.subr.mxu0 0.0
        %1841 = vmatpush1.xpose.msra.mxu0 0.0
        %1842 = vmatprep.subr.mxu0 0.0
        %1843 = vmatpush1.xpose.msra.mxu0 0.0
        %1844 = vmatprep.subr.mxu0 0.0
        %1845 = vmatpush1.xpose.msra.mxu0 0.0
        %1846 = vmatprep.subr.mxu0 0.0
        %1847 = vmatpush1.xpose.msra.mxu0 0.0
        %1848 = vmatprep.mubr.f32.mxu0 0.0
        %1849 = vmatmul.mubr.f32.gmra.mrb[0].mxu0 %v1776
        %v1850 = vpop.f32.mrb[0].mxu0
        %v1851 = vadd.f32 0.0, %v1850
        %v1852 = vpop.f32.mrb[0].mxu0
        %1853 = vdwg.mxu0
        %v1855 = vsel %vm973, %v1300, 0
        %v1858 = vsel %vm973, %v301, 0
        %v1861 = vsel %vm973, %v302, 0
        %1863 = vmatprep.subr.mxu0 0.0
        %1864 = vmatpush1.xpose.msra.mxu0 %v1858
        %1865 = vmatprep.subr.mxu0 0.0
        %1866 = vmatpush1.xpose.msra.mxu0 %v1861
        %1867 = vmatprep.subr.mxu0 0.0
        %1868 = vmatpush1.xpose.msra.mxu0 0.0
        %1869 = vmatprep.subr.mxu0 0.0
        %1870 = vmatpush1.xpose.msra.mxu0 0.0
        %1871 = vmatprep.subr.mxu0 0.0
        %1872 = vmatpush1.xpose.msra.mxu0 0.0
        %1873 = vmatprep.subr.mxu0 0.0
        %1874 = vmatpush1.xpose.msra.mxu0 0.0
        %1875 = vmatprep.subr.mxu0 0.0
        %1876 = vmatpush1.xpose.msra.mxu0 0.0
        %1877 = vmatprep.subr.mxu0 0.0
        %1878 = vmatpush1.xpose.msra.mxu0 0.0
        %1879 = vmatprep.subr.mxu0 0.0
        %1880 = vmatpush1.xpose.msra.mxu0 0.0
        %1881 = vmatprep.subr.mxu0 0.0
        %1882 = vmatpush1.xpose.msra.mxu0 0.0
        %1883 = vmatprep.subr.mxu0 0.0
        %1884 = vmatpush1.xpose.msra.mxu0 0.0
        %1885 = vmatprep.subr.mxu0 0.0
        %1886 = vmatpush1.xpose.msra.mxu0 0.0
        %1887 = vmatprep.subr.mxu0 0.0
        %1888 = vmatpush1.xpose.msra.mxu0 0.0
        %1889 = vmatprep.subr.mxu0 0.0
        %1890 = vmatpush1.xpose.msra.mxu0 0.0
        %1891 = vmatprep.subr.mxu0 0.0
        %1892 = vmatpush1.xpose.msra.mxu0 0.0
        %1893 = vmatprep.subr.mxu0 0.0
        %1894 = vmatpush1.xpose.msra.mxu0 0.0
        %1895 = vmatprep.subr.mxu0 0.0
        %1896 = vmatpush1.xpose.msra.mxu0 0.0
        %1897 = vmatprep.subr.mxu0 0.0
        %1898 = vmatpush1.xpose.msra.mxu0 0.0
        %1899 = vmatprep.subr.mxu0 0.0
        %1900 = vmatpush1.xpose.msra.mxu0 0.0
        %1901 = vmatprep.subr.mxu0 0.0
        %1902 = vmatpush1.xpose.msra.mxu0 0.0
        %1903 = vmatprep.subr.mxu0 0.0
        %1904 = vmatpush1.xpose.msra.mxu0 0.0
        %1905 = vmatprep.subr.mxu0 0.0
        %1906 = vmatpush1.xpose.msra.mxu0 0.0
        %1907 = vmatprep.subr.mxu0 0.0
        %1908 = vmatpush1.xpose.msra.mxu0 0.0
        %1909 = vmatprep.subr.mxu0 0.0
        %1910 = vmatpush1.xpose.msra.mxu0 0.0
        %1911 = vmatprep.subr.mxu0 0.0
        %1912 = vmatpush1.xpose.msra.mxu0 0.0
        %1913 = vmatprep.subr.mxu0 0.0
        %1914 = vmatpush1.xpose.msra.mxu0 0.0
        %1915 = vmatprep.subr.mxu0 0.0
        %1916 = vmatpush1.xpose.msra.mxu0 0.0
        %1917 = vmatprep.subr.mxu0 0.0
        %1918 = vmatpush1.xpose.msra.mxu0 0.0
        %1919 = vmatprep.subr.mxu0 0.0
        %1920 = vmatpush1.xpose.msra.mxu0 0.0
        %1921 = vmatprep.subr.mxu0 0.0
        %1922 = vmatpush1.xpose.msra.mxu0 0.0
        %1923 = vmatprep.subr.mxu0 0.0
        %1924 = vmatpush1.xpose.msra.mxu0 0.0
        %1925 = vmatprep.subr.mxu0 0.0
        %1926 = vmatpush1.xpose.msra.mxu0 0.0
        %1927 = vmatprep.mubr.f32.mxu0 0.0
        %1928 = vmatmul.mubr.f32.gmra.mrb[0].mxu0 %v1855
        %v1929 = vpop.f32.mrb[0].mxu0
        %v1930 = vadd.f32 0.0, %v1929
        %v1931 = vpop.f32.mrb[0].mxu0
        %1932 = vdwg.mxu0
        %v1941 = vrot.slane %v1456, 7
        %v1942 = vsel %vm1142, %v1941, %v1377
        %v1943 = vrot.slane %v1535, 6
        %v1944 = vsel %vm1144, %v1943, %v1942
        %v1945 = vrot.slane %v1614, 5
        %v1946 = vsel %vm1146, %v1945, %v1944
        %v1947 = vrot.slane %v1693, 4
        %v1948 = vsel %vm1148, %v1947, %v1946
        %v1949 = vrot.slane %v1772, 3
        %v1950 = vsel %vm1150, %v1949, %v1948
        %v1951 = vrot.slane %v1851, 2
        %v1952 = vsel %vm1152, %v1951, %v1950
        %v1953 = vrot.slane %v1930, 1
        %v1954 = vsel %vm1154, %v1953, %v1952
        %1956 = vst.msk [vmem:[%s228] sm:$0xff] %vm973, %v1954
        %v1957 = vrot.slane %v1294, 7
        %v1958 = vsel %vm1142, %v1957, %v1293
        %v1959 = vrot.slane %v1295, 6
        %v1960 = vsel %vm1144, %v1959, %v1958
        %v1961 = vrot.slane %v1296, 5
        %v1962 = vsel %vm1146, %v1961, %v1960
        %v1963 = vrot.slane %v1297, 4
        %v1964 = vsel %vm1148, %v1963, %v1962
        %v1965 = vrot.slane %v1298, 3
        %v1966 = vsel %vm1150, %v1965, %v1964
        %v1967 = vrot.slane %v1299, 2
        %v1968 = vsel %vm1152, %v1967, %v1966
        %v1969 = vrot.slane %v1300, 1
        %v1970 = vsel %vm1154, %v1969, %v1968
        %1972 = vst.msk [vmem:[%s235] sm:$0xff] %vm973, %v1970
        %s1973 = sand.u32 %s108, 1
        %s1974 = scalar_lea.sflag [#allocation3], %s1973
        %s1975 = sand.u32 %s108, 1
        %s1976 = smul.addr %s1975, 8
        %s1977 = scalar_lea.vmem [#allocation2], %s1976
        %s1978 = sand.u32 %s134, 1
        %s1979 = scalar_lea.sflag [#allocation5], %s1978
        %s1980 = sand.u32 %s134, 1
        %s1981 = smul.addr %s1980, 8
        %s1982 = scalar_lea.vmem [#allocation4], %s1981
        // Predicated region
        $region33: #{tpu_custom_call.1} parent=31 // pred_check
          %p1983 = pneg %p118
        $region34: #{tpu_custom_call.1} parent=31 // pred_check_branch
          %1985 = sbr.rel (%p1983) target = $region36
        $region35: #{tpu_custom_call.1} parent=31 // pred_region
          %s1987 = ssub.s32 128, 128
          %1988 = vsyncadd %s1974, %s1987
          %s1989 = smul.addr %s22, 128
          %s1990 = scalar_lea.hbm %s3, %s1989
          %s1992 = sshll.u32 %s1977, 4
          %s1993 = int_to_ptr.vmem [resolvable:$true] %s1992
          %1995 = dma.vmem_to_hbm [thread:$0]  %s1993, 128, %s1990, %s1974
        $region36: #{tpu_custom_call.1} parent=31 // pred_fallthru
          _
        // Predicated region
        $region37: #{tpu_custom_call.1} parent=31 // pred_check
          %p1996 = pneg %p144
        $region38: #{tpu_custom_call.1} parent=31 // pred_check_branch
          %1998 = sbr.rel (%p1996) target = $region40
        $region39: #{tpu_custom_call.1} parent=31 // pred_region
          %s2000 = ssub.s32 128, 128
          %2001 = vsyncadd %s1979, %s2000
          %s2002 = smul.addr %s22, 128
          %s2003 = scalar_lea.hbm %s4, %s2002
          %s2005 = sshll.u32 %s1982, 4
          %s2006 = int_to_ptr.vmem [resolvable:$true] %s2005
          %2008 = dma.vmem_to_hbm [thread:$0]  %s2006, 128, %s2003, %s1979
        $region40: #{tpu_custom_call.1} parent=31 // pred_fallthru
          _
      $region32: #{tpu_custom_call.1} parent=5 // pred_fallthru
        _
      %p2009 = scmp.le.s32.totalorder 2, %s17
      // Predicated region
      $region41: #{tpu_custom_call.1} parent=5 // pred_check
        %p2010 = pneg %p2009
      $region42: #{tpu_custom_call.1} parent=5 // pred_check_branch
        %2012 = sbr.rel (%p2010) target = $region44
      $region43: #{tpu_custom_call.1} parent=5 // pred_region
        %s2013 = ssub.s32 %s17, 2
        // Predicated region
        $region45: #{tpu_custom_call.1} parent=43 // pred_check
          %p2014 = pneg %p124
        $region46: #{tpu_custom_call.1} parent=43 // pred_check_branch
          %2016 = sbr.rel (%p2014) target = $region48
        $region47: #{tpu_custom_call.1} parent=43 // pred_region
          %s2017 = sand.u32 %s109, 1
          %s2018 = scalar_lea.sflag [#allocation3], %s2017
          %s2019 = sand.u32 %s109, 1
          %s2020 = smul.addr %s2019, 8
          %s2021 = scalar_lea.vmem [#allocation2], %s2020
          %2022 = dma.done %s2018, 128
        $region48: #{tpu_custom_call.1} parent=43 // pred_fallthru
          _
        // Predicated region
        $region49: #{tpu_custom_call.1} parent=43 // pred_check
          %p2023 = pneg %p150
        $region50: #{tpu_custom_call.1} parent=43 // pred_check_branch
          %2025 = sbr.rel (%p2023) target = $region52
        $region51: #{tpu_custom_call.1} parent=43 // pred_region
          %s2026 = sand.u32 %s135, 1
          %s2027 = scalar_lea.sflag [#allocation5], %s2026
          %s2028 = sand.u32 %s135, 1
          %s2029 = smul.addr %s2028, 8
          %s2030 = scalar_lea.vmem [#allocation4], %s2029
          %2031 = dma.done %s2027, 128
        $region52: #{tpu_custom_call.1} parent=43 // pred_fallthru
          _
      $region44: #{tpu_custom_call.1} parent=5 // pred_fallthru
        _
    $region6: #{tpu_custom_call.1} parent=1 // loop_footer
      %s21 = sadd.s32 1, %s17
    $region7: #{tpu_custom_call.1} parent=1 // loop_footer_branch
      %16 = sbr.rel target = $region3
    $region8: #{tpu_custom_call.1} parent=1 // loop_exit
      _
    %2032 = vsyncpa [#allocation3], 1
    %s2033 = scalar_lea.sflag [#allocation3], 1
    %2034 = vsyncpa %s2033, 1
    %2035 = vsyncpa [#allocation5], 1
    %s2036 = scalar_lea.sflag [#allocation5], 1
    %2037 = vsyncpa %s2036, 1

</llo_original>
